<compile_context>
chip_gen: v6e
topology: v6e:2x2x1
jax: 0.10.0
libtpu: 0.0.40
codegen_flags: <defaults>
</compile_context>

<pallas_src>
import functools

import jax
import jax.numpy as jnp
from jax import lax
from jax.experimental import pallas as pl
from jax.experimental.pallas import tpu as pltpu

# ---- small, self-consistent config (stands in for LlamaConfig) ----
VOCAB = 128
HIDDEN = 64
N_HEADS = 4
N_KV_HEADS = 2
HEAD_DIM = HIDDEN // N_HEADS          # 16
INTERMEDIATE = 128
N_LAYERS = 2
SEQ = 8
RMS_EPS = 1e-6
ROPE_THETA = 10000.0

Q_SIZE = N_HEADS * HEAD_DIM           # 64
KV_SIZE = N_KV_HEADS * HEAD_DIM       # 32
QKV_SIZE = Q_SIZE + 2 * KV_SIZE       # 128
ROT_COLS = Q_SIZE + KV_SIZE           # 96  (q|k columns that receive RoPE)
QKVR_RAW = QKV_SIZE + ROT_COLS        # 224
QKVR_PAD = 256                        # pad fused projection to 2x128 lanes
GROUP = N_HEADS // N_KV_HEADS         # 2
SCALE = HEAD_DIM ** -0.5


# ------------------------------------------------------------------
# Fused whole-model kernel (grid axis = decoder layer)
# ------------------------------------------------------------------
def _model_kernel(ids_ref, embed_ref, rope_ref, ln_ref,
                  w_qkvr_ref, w_o_ref, w_up_ref, w_down_ref, final_ln_ref,
                  out_ref, h_scr, r_scr):
    layer = pl.program_id(0)

    # ---- layer 0 only: embedding lookup via one-hot matmul (exact select) ----
    @pl.when(layer == 0)
    def _():
        onehot = (ids_ref[...] ==
                  lax.broadcasted_iota(jnp.int32, (SEQ, VOCAB), 1)
                  ).astype(jnp.float32)
        h_scr[...] = jnp.dot(onehot, embed_ref[...],
                             preferred_element_type=jnp.float32)
        r_scr[...] = jnp.zeros((SEQ, HIDDEN), jnp.float32)

    # ---- fused residual add + input RMSNorm (f32 statistics) ----
    x = h_scr[...] + r_scr[...]                               # (T, H) f32
    ln = ln_ref[0]                                            # (2, H)
    in_g = ln[0:1, :]
    post_g = ln[1:2, :]
    var = jnp.mean(x * x, axis=-1, keepdims=True)
    hn = x * lax.rsqrt(var + RMS_EPS) * in_g

    # ---- fused QKV + rotate_half projection (bf16 MXU, f32 acc) ----
    qkvr = jnp.dot(hn.astype(jnp.bfloat16), w_qkvr_ref[0],
                   preferred_element_type=jnp.float32)        # (T, 256) f32

    # ---- neox RoPE as pure VPU mul-add (attention scale folded into q cols) ----
    cos = rope_ref[:, :ROT_COLS]                              # (T, 96)
    sin = rope_ref[:, ROT_COLS:2 * ROT_COLS]                  # (T, 96)
    qk = qkvr[:, :ROT_COLS] * cos + qkvr[:, QKV_SIZE:QKV_SIZE + ROT_COLS] * sin
    q = qk[:, :Q_SIZE]                                        # (T, 64)  pre-scaled
    k = qk[:, Q_SIZE:]                                        # (T, 32)
    v = qkvr[:, ROT_COLS:QKV_SIZE]                            # (T, 32)

    # ---- causal GQA attention; per-head output folded into O-proj ----
    row = lax.broadcasted_iota(jnp.int32, (SEQ, SEQ), 0)
    col = lax.broadcasted_iota(jnp.int32, (SEQ, SEQ), 1)
    causal = col <= row

    q16 = q.astype(jnp.bfloat16)
    k16 = k.astype(jnp.bfloat16)
    v16 = v.astype(jnp.bfloat16)
    w_o = w_o_ref[0]                                          # (64, 64) bf16

    attn_out = jnp.zeros((SEQ, HIDDEN), jnp.float32)
    for h in range(N_HEADS):                                  # 4 heads, fully unrolled
        g = h // GROUP
        qh = q16[:, h * HEAD_DIM:(h + 1) * HEAD_DIM]          # (T, D)
        kh = k16[:, g * HEAD_DIM:(g + 1) * HEAD_DIM]
        vh = v16[:, g * HEAD_DIM:(g + 1) * HEAD_DIM]
        s = lax.dot_general(qh, kh, (((1,), (1,)), ((), ())),
                            preferred_element_type=jnp.float32)   # (T, T) f32
        s = jnp.where(causal, s, -1e30)
        m = jnp.max(s, axis=-1, keepdims=True)
        p = jnp.exp(s - m)
        p = p * pl.reciprocal(jnp.sum(p, axis=-1, keepdims=True), approx=True)
        hv = jnp.dot(p.astype(jnp.bfloat16), vh,
                     preferred_element_type=jnp.float32)          # (T, D)
        attn_out = attn_out + jnp.dot(
            hv.astype(jnp.bfloat16), w_o[h * HEAD_DIM:(h + 1) * HEAD_DIM, :],
            preferred_element_type=jnp.float32)                   # (T, H)

    # ---- post-attention fused residual add + RMSNorm ----
    x2 = attn_out + x
    var2 = jnp.mean(x2 * x2, axis=-1, keepdims=True)
    hn2 = x2 * lax.rsqrt(var2 + RMS_EPS) * post_g

    # ---- MLP: up_proj -> relu^2 -> down_proj ----
    up = jnp.dot(hn2.astype(jnp.bfloat16), w_up_ref[0],
                 preferred_element_type=jnp.float32)          # (T, I) f32
    up = jnp.maximum(up, 0.0)
    up = up * up                                              # Arcee 'relu2'
    down = jnp.dot(up.astype(jnp.bfloat16), w_down_ref[0],
                   preferred_element_type=jnp.float32)        # (T, H)

    # carry state for next layer (VMEM-resident across grid steps)
    h_scr[...] = down
    r_scr[...] = x2

    # ---- last layer only: final fused add + RMSNorm, single HBM writeback ----
    @pl.when(layer == N_LAYERS - 1)
    def _():
        y = down + x2
        var3 = jnp.mean(y * y, axis=-1, keepdims=True)
        out_ref[...] = y * lax.rsqrt(var3 + RMS_EPS) * final_ln_ref[...]


# ------------------------------------------------------------------
# Parameters (PyTorch-like layout) and packing (done once at load time)
# ------------------------------------------------------------------
def init_params(key):
    params = {}
    k_emb, key = jax.random.split(key)
    params["embed"] = jax.random.normal(k_emb, (VOCAB, HIDDEN), jnp.float32) * 0.02
    layers = []
    for i in range(N_LAYERS):
        keys = jax.random.split(jax.random.fold_in(key, i), 4)
        layers.append({
            "input_ln": jnp.ones((HIDDEN,), jnp.float32),
            "post_ln": jnp.ones((HIDDEN,), jnp.float32),
            "w_qkv": jax.random.normal(keys[0], (HIDDEN, QKV_SIZE), jnp.float32) * 0.02,
            "w_o": jax.random.normal(keys[1], (Q_SIZE, HIDDEN), jnp.float32) * 0.02,
            "w_up": jax.random.normal(keys[2], (HIDDEN, INTERMEDIATE), jnp.float32) * 0.02,
            "w_down": jax.random.normal(keys[3], (INTERMEDIATE, HIDDEN), jnp.float32) * 0.02,
        })
    params["layers"] = layers
    params["final_ln"] = jnp.ones((HIDDEN,), jnp.float32)
    return params


def _rotate_half_matrix(n_heads):
    """Block-diag per-head R with x @ R == rotate_half(x) (neox style)."""
    half = HEAD_DIM // 2
    idx = jnp.arange(half)
    block = jnp.zeros((HEAD_DIM, HEAD_DIM), jnp.float32)
    block = block.at[idx, half + idx].set(1.0)
    block = block.at[half + idx, idx].set(-1.0)
    return jnp.kron(jnp.eye(n_heads, dtype=jnp.float32), block)


def pack_params(params):
    """Stack per-layer weights, fold rotate_half into W_qkv, cast to bf16."""
    rot_q = _rotate_half_matrix(N_HEADS)                      # (64, 64)
    rot_k = _rotate_half_matrix(N_KV_HEADS)                   # (32, 32)

    qkvr, w_o, w_up, w_down, ln = [], [], [], [], []
    for layer in params["layers"]:
        w_qkv = layer["w_qkv"]
        w_q = w_qkv[:, :Q_SIZE]
        w_k = w_qkv[:, Q_SIZE:Q_SIZE + KV_SIZE]
        fused = jnp.concatenate(
            [w_qkv, w_q @ rot_q, w_k @ rot_k,
             jnp.zeros((HIDDEN, QKVR_PAD - QKVR_RAW), jnp.float32)], axis=-1)
        qkvr.append(fused.astype(jnp.bfloat16))                # (64, 256)
        w_o.append(layer["w_o"].astype(jnp.bfloat16))
        w_up.append(layer["w_up"].astype(jnp.bfloat16))
        w_down.append(layer["w_down"].astype(jnp.bfloat16))
        ln.append(jnp.stack([layer["input_ln"], layer["post_ln"]]))   # (2, H)

    return {
        "embed": params["embed"],                              # (VOCAB, H) f32
        "ln": jnp.stack(ln),                                   # (L, 2, H) f32
        "w_qkvr": jnp.stack(qkvr),                             # (L, H, 256) bf16
        "w_o": jnp.stack(w_o),                                 # (L, 64, H) bf16
        "w_up": jnp.stack(w_up),                               # (L, H, I) bf16
        "w_down": jnp.stack(w_down),                           # (L, I, H) bf16
        "final_ln": params["final_ln"].reshape(1, HIDDEN),     # (1, H) f32
    }


def rope_table(positions):
    """Packed (T, 192) table: [cos_q*scale | cos_k | sin_q*scale | sin_k]."""
    inv_freq = 1.0 / (ROPE_THETA ** (jnp.arange(0, HEAD_DIM, 2, dtype=jnp.float32)
                                     / HEAD_DIM))
    freqs = positions.astype(jnp.float32)[:, None] * inv_freq[None, :]   # (T, D/2)
    cos = jnp.concatenate([jnp.cos(freqs), jnp.cos(freqs)], axis=-1)     # (T, D)
    sin = jnp.concatenate([jnp.sin(freqs), jnp.sin(freqs)], axis=-1)
    cos_qk = jnp.concatenate([jnp.tile(cos, (1, N_HEADS)) * SCALE,
                              jnp.tile(cos, (1, N_KV_HEADS))], axis=-1)  # (T, 96)
    sin_qk = jnp.concatenate([jnp.tile(sin, (1, N_HEADS)) * SCALE,
                              jnp.tile(sin, (1, N_KV_HEADS))], axis=-1)  # (T, 96)
    return jnp.concatenate([cos_qk, sin_qk], axis=-1)                    # (T, 192)


# ------------------------------------------------------------------
# Full model forward: ONE pallas_call
# ------------------------------------------------------------------
@jax.jit
def arcee_model_forward(packed, input_ids, positions):
    rope = rope_table(positions)                               # (T, 192) f32
    ids2d = input_ids.astype(jnp.int32).reshape(SEQ, 1)

    return pl.pallas_call(
        _model_kernel,
        out_shape=jax.ShapeDtypeStruct((SEQ, HIDDEN), jnp.float32),
        grid_spec=pltpu.PrefetchScalarGridSpec(
            num_scalar_prefetch=0,
            grid=(N_LAYERS,),
            in_specs=[
                pl.BlockSpec((SEQ, 1), lambda l: (0, 0)),                 # token ids
                pl.BlockSpec((VOCAB, HIDDEN), lambda l: (0, 0)),          # embedding
                pl.BlockSpec((SEQ, 2 * ROT_COLS), lambda l: (0, 0)),      # cos/sin
                pl.BlockSpec((1, 2, HIDDEN), lambda l: (l, 0, 0)),        # norms
                pl.BlockSpec((1, HIDDEN, QKVR_PAD), lambda l: (l, 0, 0)), # qkv+rot
                pl.BlockSpec((1, Q_SIZE, HIDDEN), lambda l: (l, 0, 0)),   # o_proj
                pl.BlockSpec((1, HIDDEN, INTERMEDIATE), lambda l: (l, 0, 0)),
                pl.BlockSpec((1, INTERMEDIATE, HIDDEN), lambda l: (l, 0, 0)),
                pl.BlockSpec((1, HIDDEN), lambda l: (0, 0)),              # final norm
            ],
            out_specs=pl.BlockSpec((SEQ, HIDDEN), lambda l: (0, 0)),
            scratch_shapes=[pltpu.VMEM((SEQ, HIDDEN), jnp.float32),       # hidden
                            pltpu.VMEM((SEQ, HIDDEN), jnp.float32)],      # residual
        ),
        compiler_params=pltpu.CompilerParams(
            dimension_semantics=("arbitrary",)),
    )(ids2d, packed["embed"], rope, packed["ln"], packed["w_qkvr"],
      packed["w_o"], packed["w_up"], packed["w_down"], packed["final_ln"])


if __name__ == "__main__":
    key = jax.random.PRNGKey(0)
    params = init_params(key)
    packed = pack_params(params)                # one-time weight packing

    input_ids = jax.random.randint(jax.random.fold_in(key, 123), (SEQ,), 0, VOCAB,
                                   dtype=jnp.int32)
    positions = jnp.arange(SEQ, dtype=jnp.int32)

    out = arcee_model_forward(packed, input_ids, positions)
    jax.block_until_ready(out)
    assert out.shape == (SEQ, HIDDEN)
    assert bool(jnp.all(jnp.isfinite(out)))
    print("KERNEL_OK")
</pallas_src>

<mosaic_0001>
module attributes {stable_mosaic.version = 11 : i64} {
  func.func @_model_kernel(%arg0: i32, %arg1: memref<8x1xi32, #tpu.memory_space<vmem>>, %arg2: memref<128x64xf32, #tpu.memory_space<vmem>>, %arg3: memref<8x192xf32, #tpu.memory_space<vmem>>, %arg4: memref<1x2x64xf32, #tpu.memory_space<vmem>>, %arg5: memref<1x64x256xbf16, #tpu.memory_space<vmem>>, %arg6: memref<1x64x64xbf16, #tpu.memory_space<vmem>>, %arg7: memref<1x64x128xbf16, #tpu.memory_space<vmem>>, %arg8: memref<1x128x64xbf16, #tpu.memory_space<vmem>>, %arg9: memref<1x64xf32, #tpu.memory_space<vmem>>, %arg10: memref<8x64xf32, #tpu.memory_space<vmem>>, %arg11: memref<8x64xf32, #tpu.memory_space<vmem>>, %arg12: memref<8x64xf32, #tpu.memory_space<vmem>>) attributes {dimension_semantics = [#tpu.dimension_semantics<arbitrary>], iteration_bounds = array<i64: 2>, scalar_prefetch = 0 : i64, scratch_operands = 2 : i64, tpu.core_type = #tpu.core_type<tc>, window_params = [{pipeline_mode = #tpu.pipeline_mode<synchronous>, transform_indices = @transform_0, window_bounds = array<i64: 8, 1>}, {pipeline_mode = #tpu.pipeline_mode<synchronous>, transform_indices = @transform_1, window_bounds = array<i64: 128, 64>}, {pipeline_mode = #tpu.pipeline_mode<synchronous>, transform_indices = @transform_2, window_bounds = array<i64: 8, 192>}, {transform_indices = @transform_3, window_bounds = array<i64: 1, 2, 64>}, {transform_indices = @transform_4, window_bounds = array<i64: 1, 64, 256>}, {transform_indices = @transform_5, window_bounds = array<i64: 1, 64, 64>}, {transform_indices = @transform_6, window_bounds = array<i64: 1, 64, 128>}, {transform_indices = @transform_7, window_bounds = array<i64: 1, 128, 64>}, {pipeline_mode = #tpu.pipeline_mode<synchronous>, transform_indices = @transform_8, window_bounds = array<i64: 1, 64>}, {pipeline_mode = #tpu.pipeline_mode<synchronous>, transform_indices = @transform_9, window_bounds = array<i64: 8, 64>}]} {
    %c0_i32 = arith.constant 0 : i32
    %0 = arith.cmpi eq, %arg0, %c0_i32 : i32
    %1 = arith.extui %0 : i1 to i32
    %c0_i32_0 = arith.constant 0 : i32
    %2 = arith.cmpi ne, %1, %c0_i32_0 : i32
    scf.if %2 {
      %c0_61 = arith.constant 0 : index
      %c0_62 = arith.constant 0 : index
      %162 = vector.load %arg1[%c0_61, %c0_62] : memref<8x1xi32, #tpu.memory_space<vmem>>, vector<8x1xi32>
      %163 = tpu.iota {dimensions = array<i32: 1>} : vector<8x128xi32>
      %164 = vector.broadcast %162 : vector<8x1xi32> to vector<8x128xi32>
      %165 = arith.cmpi eq, %164, %163 : vector<8x128xi32>
      %166 = arith.extui %165 : vector<8x128xi1> to vector<8x128xi32>
      %167 = arith.sitofp %166 : vector<8x128xi32> to vector<8x128xf32>
      %c0_63 = arith.constant 0 : index
      %c0_64 = arith.constant 0 : index
      %168 = vector.load %arg2[%c0_63, %c0_64] : memref<128x64xf32, #tpu.memory_space<vmem>>, vector<128x64xf32>
      %cst_65 = arith.constant dense<0.000000e+00> : vector<8x64xf32>
      %169 = tpu.matmul %167, %168, %cst_65 {dimension_numbers = #tpu.dot_dimension_numbers<[1], [0], [0], [1], [0, 0, 1, 1], [], []>} : vector<8x128xf32>, vector<128x64xf32>, vector<8x64xf32> -> vector<8x64xf32>
      %c0_66 = arith.constant 0 : index
      %c0_67 = arith.constant 0 : index
      %170 = vector.load %arg11[%c0_66, %c0_67] : memref<8x64xf32, #tpu.memory_space<vmem>>, vector<8x64xf32>
      tpu.vector_store %arg11[%c0_66, %c0_67], %169 {strides = array<i32>} : memref<8x64xf32, #tpu.memory_space<vmem>>, vector<8x64xf32>,
      %cst_68 = arith.constant 0.000000e+00 : f32
      %171 = vector.broadcast %cst_68 : f32 to vector<8x64xf32>
      %c0_69 = arith.constant 0 : index
      %c0_70 = arith.constant 0 : index
      %172 = vector.load %arg12[%c0_69, %c0_70] : memref<8x64xf32, #tpu.memory_space<vmem>>, vector<8x64xf32>
      tpu.vector_store %arg12[%c0_69, %c0_70], %171 {strides = array<i32>} : memref<8x64xf32, #tpu.memory_space<vmem>>, vector<8x64xf32>,
    } else {
    }
    %c0 = arith.constant 0 : index
    %c0_1 = arith.constant 0 : index
    %3 = vector.load %arg11[%c0, %c0_1] : memref<8x64xf32, #tpu.memory_space<vmem>>, vector<8x64xf32>
    %c0_2 = arith.constant 0 : index
    %c0_3 = arith.constant 0 : index
    %4 = vector.load %arg12[%c0_2, %c0_3] : memref<8x64xf32, #tpu.memory_space<vmem>>, vector<8x64xf32>
    %5 = arith.addf %3, %4 : vector<8x64xf32>
    %c0_4 = arith.constant 0 : index
    %c0_5 = arith.constant 0 : index
    %c0_6 = arith.constant 0 : index
    %6 = vector.load %arg4[%c0_4, %c0_5, %c0_6] : memref<1x2x64xf32, #tpu.memory_space<vmem>>, vector<1x2x64xf32>
    %7 = vector.shape_cast %6 : vector<1x2x64xf32> to vector<2x64xf32>
    %8 = vector.extract_strided_slice %7 {offsets = [0, 0], sizes = [1, 64], strides = [1, 1]} : vector<2x64xf32> to vector<1x64xf32>
    %9 = vector.extract_strided_slice %7 {offsets = [1, 0], sizes = [1, 64], strides = [1, 1]} : vector<2x64xf32> to vector<1x64xf32>
    %10 = arith.mulf %5, %5 : vector<8x64xf32>
    %cst = arith.constant dense<0.000000e+00> : vector<8xf32>
    %11 = vector.multi_reduction <add>, %10, %cst [1] : vector<8x64xf32> to vector<8xf32>
    %12 = vector.shape_cast %11 : vector<8xf32> to vector<8x1xf32>
    %cst_7 = arith.constant 6.400000e+01 : f32
    %13 = vector.broadcast %cst_7 : f32 to vector<8x1xf32>
    %14 = arith.divf %12, %13 : vector<8x1xf32>
    %cst_8 = arith.constant 9.99999997E-7 : f32
    %15 = vector.broadcast %cst_8 : f32 to vector<8x1xf32>
    %16 = arith.addf %14, %15 : vector<8x1xf32>
    %17 = math.rsqrt %16 : vector<8x1xf32>
    %18 = vector.broadcast %17 : vector<8x1xf32> to vector<8x64xf32>
    %19 = arith.mulf %5, %18 : vector<8x64xf32>
    %20 = vector.broadcast %8 : vector<1x64xf32> to vector<8x64xf32>
    %21 = arith.mulf %19, %20 : vector<8x64xf32>
    %22 = arith.truncf %21 : vector<8x64xf32> to vector<8x64xbf16>
    %c0_9 = arith.constant 0 : index
    %c0_10 = arith.constant 0 : index
    %c0_11 = arith.constant 0 : index
    %23 = vector.load %arg5[%c0_9, %c0_10, %c0_11] : memref<1x64x256xbf16, #tpu.memory_space<vmem>>, vector<1x64x256xbf16>
    %24 = vector.shape_cast %23 : vector<1x64x256xbf16> to vector<64x256xbf16>
    %cst_12 = arith.constant dense<0.000000e+00> : vector<8x256xf32>
    %25 = tpu.matmul %22, %24, %cst_12 {dimension_numbers = #tpu.dot_dimension_numbers<[1], [0], [0], [1], [0, 0, 1, 1], [], []>} : vector<8x64xbf16>, vector<64x256xbf16>, vector<8x256xf32> -> vector<8x256xf32>
    %c0_13 = arith.constant 0 : index
    %c0_14 = arith.constant 0 : index
    %26 = vector.load %arg3[%c0_13, %c0_14] : memref<8x192xf32, #tpu.memory_space<vmem>>, vector<8x96xf32>
    %c0_15 = arith.constant 0 : index
    %c96 = arith.constant 96 : index
    %27 = vector.load %arg3[%c0_15, %c96] : memref<8x192xf32, #tpu.memory_space<vmem>>, vector<8x96xf32>
    %28 = vector.extract_strided_slice %25 {offsets = [0, 0], sizes = [8, 96], strides = [1, 1]} : vector<8x256xf32> to vector<8x96xf32>
    %29 = arith.mulf %28, %26 : vector<8x96xf32>
    %30 = vector.extract_strided_slice %25 {offsets = [0, 128], sizes = [8, 96], strides = [1, 1]} : vector<8x256xf32> to vector<8x96xf32>
    %31 = arith.mulf %30, %27 : vector<8x96xf32>
    %32 = arith.addf %29, %31 : vector<8x96xf32>
    %33 = vector.extract_strided_slice %32 {offsets = [0, 0], sizes = [8, 64], strides = [1, 1]} : vector<8x96xf32> to vector<8x64xf32>
    %34 = vector.extract_strided_slice %32 {offsets = [0, 64], sizes = [8, 32], strides = [1, 1]} : vector<8x96xf32> to vector<8x32xf32>
    %35 = vector.extract_strided_slice %25 {offsets = [0, 96], sizes = [8, 32], strides = [1, 1]} : vector<8x256xf32> to vector<8x32xf32>
    %36 = tpu.iota {dimensions = array<i32: 0>} : vector<8x8xi32>
    %37 = tpu.iota {dimensions = array<i32: 1>} : vector<8x8xi32>
    %38 = arith.cmpi sle, %37, %36 : vector<8x8xi32>
    %39 = arith.truncf %33 : vector<8x64xf32> to vector<8x64xbf16>
    %40 = arith.truncf %34 : vector<8x32xf32> to vector<8x32xbf16>
    %41 = arith.truncf %35 : vector<8x32xf32> to vector<8x32xbf16>
    %c0_16 = arith.constant 0 : index
    %c0_17 = arith.constant 0 : index
    %c0_18 = arith.constant 0 : index
    %42 = vector.load %arg6[%c0_16, %c0_17, %c0_18] : memref<1x64x64xbf16, #tpu.memory_space<vmem>>, vector<1x64x64xbf16>
    %43 = vector.shape_cast %42 : vector<1x64x64xbf16> to vector<64x64xbf16>
    %cst_19 = arith.constant 0.000000e+00 : f32
    %44 = vector.broadcast %cst_19 : f32 to vector<8x64xf32>
    %45 = vector.extract_strided_slice %39 {offsets = [0, 0], sizes = [8, 16], strides = [1, 1]} : vector<8x64xbf16> to vector<8x16xbf16>
    %46 = vector.extract_strided_slice %40 {offsets = [0, 0], sizes = [8, 16], strides = [1, 1]} : vector<8x32xbf16> to vector<8x16xbf16>
    %47 = vector.extract_strided_slice %41 {offsets = [0, 0], sizes = [8, 16], strides = [1, 1]} : vector<8x32xbf16> to vector<8x16xbf16>
    %cst_20 = arith.constant dense<0.000000e+00> : vector<8x8xf32>
    %48 = tpu.matmul %45, %46, %cst_20 {dimension_numbers = #tpu.dot_dimension_numbers<[1], [1], [0], [0], [0, 0, 1, 0], [], []>} : vector<8x16xbf16>, vector<8x16xbf16>, vector<8x8xf32> -> vector<8x8xf32>
    %cst_21 = arith.constant -1.000000e+30 : f32
    %49 = vector.broadcast %cst_21 : f32 to vector<8x8xf32>
    %50 = arith.select %38, %48, %49 : vector<8x8xi1>, vector<8x8xf32>
    %cst_22 = arith.constant dense<0xFF800000> : vector<8xf32>
    %51 = vector.multi_reduction <maximumf>, %50, %cst_22 [1] : vector<8x8xf32> to vector<8xf32>
    %52 = vector.shape_cast %51 : vector<8xf32> to vector<8x1xf32>
    %53 = vector.broadcast %52 : vector<8x1xf32> to vector<8x8xf32>
    %54 = arith.subf %50, %53 : vector<8x8xf32>
    %55 = math.exp %54 : vector<8x8xf32>
    %cst_23 = arith.constant dense<0.000000e+00> : vector<8xf32>
    %56 = vector.multi_reduction <add>, %55, %cst_23 [1] : vector<8x8xf32> to vector<8xf32>
    %57 = vector.shape_cast %56 : vector<8xf32> to vector<8x1xf32>
    %58 = tpu.reciprocal %57 {approx = true} : vector<8x1xf32> -> vector<8x1xf32>
    %59 = vector.broadcast %58 : vector<8x1xf32> to vector<8x8xf32>
    %60 = arith.mulf %55, %59 : vector<8x8xf32>
    %61 = arith.truncf %60 : vector<8x8xf32> to vector<8x8xbf16>
    %cst_24 = arith.constant dense<0.000000e+00> : vector<8x16xf32>
    %62 = tpu.matmul %61, %47, %cst_24 {dimension_numbers = #tpu.dot_dimension_numbers<[1], [0], [0], [1], [0, 0, 1, 1], [], []>} : vector<8x8xbf16>, vector<8x16xbf16>, vector<8x16xf32> -> vector<8x16xf32>
    %63 = arith.truncf %62 : vector<8x16xf32> to vector<8x16xbf16>
    %64 = vector.extract_strided_slice %43 {offsets = [0, 0], sizes = [16, 64], strides = [1, 1]} : vector<64x64xbf16> to vector<16x64xbf16>
    %cst_25 = arith.constant dense<0.000000e+00> : vector<8x64xf32>
    %65 = tpu.matmul %63, %64, %cst_25 {dimension_numbers = #tpu.dot_dimension_numbers<[1], [0], [0], [1], [0, 0, 1, 1], [], []>} : vector<8x16xbf16>, vector<16x64xbf16>, vector<8x64xf32> -> vector<8x64xf32>
    %66 = arith.addf %44, %65 : vector<8x64xf32>
    %67 = vector.extract_strided_slice %39 {offsets = [0, 16], sizes = [8, 16], strides = [1, 1]} : vector<8x64xbf16> to vector<8x16xbf16>
    %68 = vector.extract_strided_slice %40 {offsets = [0, 0], sizes = [8, 16], strides = [1, 1]} : vector<8x32xbf16> to vector<8x16xbf16>
    %69 = vector.extract_strided_slice %41 {offsets = [0, 0], sizes = [8, 16], strides = [1, 1]} : vector<8x32xbf16> to vector<8x16xbf16>
    %cst_26 = arith.constant dense<0.000000e+00> : vector<8x8xf32>
    %70 = tpu.matmul %67, %68, %cst_26 {dimension_numbers = #tpu.dot_dimension_numbers<[1], [1], [0], [0], [0, 0, 1, 0], [], []>} : vector<8x16xbf16>, vector<8x16xbf16>, vector<8x8xf32> -> vector<8x8xf32>
    %cst_27 = arith.constant -1.000000e+30 : f32
    %71 = vector.broadcast %cst_27 : f32 to vector<8x8xf32>
    %72 = arith.select %38, %70, %71 : vector<8x8xi1>, vector<8x8xf32>
    %cst_28 = arith.constant dense<0xFF800000> : vector<8xf32>
    %73 = vector.multi_reduction <maximumf>, %72, %cst_28 [1] : vector<8x8xf32> to vector<8xf32>
    %74 = vector.shape_cast %73 : vector<8xf32> to vector<8x1xf32>
    %75 = vector.broadcast %74 : vector<8x1xf32> to vector<8x8xf32>
    %76 = arith.subf %72, %75 : vector<8x8xf32>
    %77 = math.exp %76 : vector<8x8xf32>
    %cst_29 = arith.constant dense<0.000000e+00> : vector<8xf32>
    %78 = vector.multi_reduction <add>, %77, %cst_29 [1] : vector<8x8xf32> to vector<8xf32>
    %79 = vector.shape_cast %78 : vector<8xf32> to vector<8x1xf32>
    %80 = tpu.reciprocal %79 {approx = true} : vector<8x1xf32> -> vector<8x1xf32>
    %81 = vector.broadcast %80 : vector<8x1xf32> to vector<8x8xf32>
    %82 = arith.mulf %77, %81 : vector<8x8xf32>
    %83 = arith.truncf %82 : vector<8x8xf32> to vector<8x8xbf16>
    %cst_30 = arith.constant dense<0.000000e+00> : vector<8x16xf32>
    %84 = tpu.matmul %83, %69, %cst_30 {dimension_numbers = #tpu.dot_dimension_numbers<[1], [0], [0], [1], [0, 0, 1, 1], [], []>} : vector<8x8xbf16>, vector<8x16xbf16>, vector<8x16xf32> -> vector<8x16xf32>
    %85 = arith.truncf %84 : vector<8x16xf32> to vector<8x16xbf16>
    %86 = vector.extract_strided_slice %43 {offsets = [16, 0], sizes = [16, 64], strides = [1, 1]} : vector<64x64xbf16> to vector<16x64xbf16>
    %cst_31 = arith.constant dense<0.000000e+00> : vector<8x64xf32>
    %87 = tpu.matmul %85, %86, %cst_31 {dimension_numbers = #tpu.dot_dimension_numbers<[1], [0], [0], [1], [0, 0, 1, 1], [], []>} : vector<8x16xbf16>, vector<16x64xbf16>, vector<8x64xf32> -> vector<8x64xf32>
    %88 = arith.addf %66, %87 : vector<8x64xf32>
    %89 = vector.extract_strided_slice %39 {offsets = [0, 32], sizes = [8, 16], strides = [1, 1]} : vector<8x64xbf16> to vector<8x16xbf16>
    %90 = vector.extract_strided_slice %40 {offsets = [0, 16], sizes = [8, 16], strides = [1, 1]} : vector<8x32xbf16> to vector<8x16xbf16>
    %91 = vector.extract_strided_slice %41 {offsets = [0, 16], sizes = [8, 16], strides = [1, 1]} : vector<8x32xbf16> to vector<8x16xbf16>
    %cst_32 = arith.constant dense<0.000000e+00> : vector<8x8xf32>
    %92 = tpu.matmul %89, %90, %cst_32 {dimension_numbers = #tpu.dot_dimension_numbers<[1], [1], [0], [0], [0, 0, 1, 0], [], []>} : vector<8x16xbf16>, vector<8x16xbf16>, vector<8x8xf32> -> vector<8x8xf32>
    %cst_33 = arith.constant -1.000000e+30 : f32
    %93 = vector.broadcast %cst_33 : f32 to vector<8x8xf32>
    %94 = arith.select %38, %92, %93 : vector<8x8xi1>, vector<8x8xf32>
    %cst_34 = arith.constant dense<0xFF800000> : vector<8xf32>
    %95 = vector.multi_reduction <maximumf>, %94, %cst_34 [1] : vector<8x8xf32> to vector<8xf32>
    %96 = vector.shape_cast %95 : vector<8xf32> to vector<8x1xf32>
    %97 = vector.broadcast %96 : vector<8x1xf32> to vector<8x8xf32>
    %98 = arith.subf %94, %97 : vector<8x8xf32>
    %99 = math.exp %98 : vector<8x8xf32>
    %cst_35 = arith.constant dense<0.000000e+00> : vector<8xf32>
    %100 = vector.multi_reduction <add>, %99, %cst_35 [1] : vector<8x8xf32> to vector<8xf32>
    %101 = vector.shape_cast %100 : vector<8xf32> to vector<8x1xf32>
    %102 = tpu.reciprocal %101 {approx = true} : vector<8x1xf32> -> vector<8x1xf32>
    %103 = vector.broadcast %102 : vector<8x1xf32> to vector<8x8xf32>
    %104 = arith.mulf %99, %103 : vector<8x8xf32>
    %105 = arith.truncf %104 : vector<8x8xf32> to vector<8x8xbf16>
    %cst_36 = arith.constant dense<0.000000e+00> : vector<8x16xf32>
    %106 = tpu.matmul %105, %91, %cst_36 {dimension_numbers = #tpu.dot_dimension_numbers<[1], [0], [0], [1], [0, 0, 1, 1], [], []>} : vector<8x8xbf16>, vector<8x16xbf16>, vector<8x16xf32> -> vector<8x16xf32>
    %107 = arith.truncf %106 : vector<8x16xf32> to vector<8x16xbf16>
    %108 = vector.extract_strided_slice %43 {offsets = [32, 0], sizes = [16, 64], strides = [1, 1]} : vector<64x64xbf16> to vector<16x64xbf16>
    %cst_37 = arith.constant dense<0.000000e+00> : vector<8x64xf32>
    %109 = tpu.matmul %107, %108, %cst_37 {dimension_numbers = #tpu.dot_dimension_numbers<[1], [0], [0], [1], [0, 0, 1, 1], [], []>} : vector<8x16xbf16>, vector<16x64xbf16>, vector<8x64xf32> -> vector<8x64xf32>
    %110 = arith.addf %88, %109 : vector<8x64xf32>
    %111 = vector.extract_strided_slice %39 {offsets = [0, 48], sizes = [8, 16], strides = [1, 1]} : vector<8x64xbf16> to vector<8x16xbf16>
    %112 = vector.extract_strided_slice %40 {offsets = [0, 16], sizes = [8, 16], strides = [1, 1]} : vector<8x32xbf16> to vector<8x16xbf16>
    %113 = vector.extract_strided_slice %41 {offsets = [0, 16], sizes = [8, 16], strides = [1, 1]} : vector<8x32xbf16> to vector<8x16xbf16>
    %cst_38 = arith.constant dense<0.000000e+00> : vector<8x8xf32>
    %114 = tpu.matmul %111, %112, %cst_38 {dimension_numbers = #tpu.dot_dimension_numbers<[1], [1], [0], [0], [0, 0, 1, 0], [], []>} : vector<8x16xbf16>, vector<8x16xbf16>, vector<8x8xf32> -> vector<8x8xf32>
    %cst_39 = arith.constant -1.000000e+30 : f32
    %115 = vector.broadcast %cst_39 : f32 to vector<8x8xf32>
    %116 = arith.select %38, %114, %115 : vector<8x8xi1>, vector<8x8xf32>
    %cst_40 = arith.constant dense<0xFF800000> : vector<8xf32>
    %117 = vector.multi_reduction <maximumf>, %116, %cst_40 [1] : vector<8x8xf32> to vector<8xf32>
    %118 = vector.shape_cast %117 : vector<8xf32> to vector<8x1xf32>
    %119 = vector.broadcast %118 : vector<8x1xf32> to vector<8x8xf32>
    %120 = arith.subf %116, %119 : vector<8x8xf32>
    %121 = math.exp %120 : vector<8x8xf32>
    %cst_41 = arith.constant dense<0.000000e+00> : vector<8xf32>
    %122 = vector.multi_reduction <add>, %121, %cst_41 [1] : vector<8x8xf32> to vector<8xf32>
    %123 = vector.shape_cast %122 : vector<8xf32> to vector<8x1xf32>
    %124 = tpu.reciprocal %123 {approx = true} : vector<8x1xf32> -> vector<8x1xf32>
    %125 = vector.broadcast %124 : vector<8x1xf32> to vector<8x8xf32>
    %126 = arith.mulf %121, %125 : vector<8x8xf32>
    %127 = arith.truncf %126 : vector<8x8xf32> to vector<8x8xbf16>
    %cst_42 = arith.constant dense<0.000000e+00> : vector<8x16xf32>
    %128 = tpu.matmul %127, %113, %cst_42 {dimension_numbers = #tpu.dot_dimension_numbers<[1], [0], [0], [1], [0, 0, 1, 1], [], []>} : vector<8x8xbf16>, vector<8x16xbf16>, vector<8x16xf32> -> vector<8x16xf32>
    %129 = arith.truncf %128 : vector<8x16xf32> to vector<8x16xbf16>
    %130 = vector.extract_strided_slice %43 {offsets = [48, 0], sizes = [16, 64], strides = [1, 1]} : vector<64x64xbf16> to vector<16x64xbf16>
    %cst_43 = arith.constant dense<0.000000e+00> : vector<8x64xf32>
    %131 = tpu.matmul %129, %130, %cst_43 {dimension_numbers = #tpu.dot_dimension_numbers<[1], [0], [0], [1], [0, 0, 1, 1], [], []>} : vector<8x16xbf16>, vector<16x64xbf16>, vector<8x64xf32> -> vector<8x64xf32>
    %132 = arith.addf %110, %131 : vector<8x64xf32>
    %133 = arith.addf %132, %5 : vector<8x64xf32>
    %134 = arith.mulf %133, %133 : vector<8x64xf32>
    %cst_44 = arith.constant dense<0.000000e+00> : vector<8xf32>
    %135 = vector.multi_reduction <add>, %134, %cst_44 [1] : vector<8x64xf32> to vector<8xf32>
    %136 = vector.shape_cast %135 : vector<8xf32> to vector<8x1xf32>
    %cst_45 = arith.constant 6.400000e+01 : f32
    %137 = vector.broadcast %cst_45 : f32 to vector<8x1xf32>
    %138 = arith.divf %136, %137 : vector<8x1xf32>
    %cst_46 = arith.constant 9.99999997E-7 : f32
    %139 = vector.broadcast %cst_46 : f32 to vector<8x1xf32>
    %140 = arith.addf %138, %139 : vector<8x1xf32>
    %141 = math.rsqrt %140 : vector<8x1xf32>
    %142 = vector.broadcast %141 : vector<8x1xf32> to vector<8x64xf32>
    %143 = arith.mulf %133, %142 : vector<8x64xf32>
    %144 = vector.broadcast %9 : vector<1x64xf32> to vector<8x64xf32>
    %145 = arith.mulf %143, %144 : vector<8x64xf32>
    %146 = arith.truncf %145 : vector<8x64xf32> to vector<8x64xbf16>
    %c0_47 = arith.constant 0 : index
    %c0_48 = arith.constant 0 : index
    %c0_49 = arith.constant 0 : index
    %147 = vector.load %arg7[%c0_47, %c0_48, %c0_49] : memref<1x64x128xbf16, #tpu.memory_space<vmem>>, vector<1x64x128xbf16>
    %148 = vector.shape_cast %147 : vector<1x64x128xbf16> to vector<64x128xbf16>
    %cst_50 = arith.constant dense<0.000000e+00> : vector<8x128xf32>
    %149 = tpu.matmul %146, %148, %cst_50 {dimension_numbers = #tpu.dot_dimension_numbers<[1], [0], [0], [1], [0, 0, 1, 1], [], []>} : vector<8x64xbf16>, vector<64x128xbf16>, vector<8x128xf32> -> vector<8x128xf32>
    %cst_51 = arith.constant 0.000000e+00 : f32
    %150 = vector.broadcast %cst_51 : f32 to vector<8x128xf32>
    %151 = arith.maximumf %149, %150 : vector<8x128xf32>
    %152 = arith.mulf %151, %151 : vector<8x128xf32>
    %153 = arith.truncf %152 : vector<8x128xf32> to vector<8x128xbf16>
    %c0_52 = arith.constant 0 : index
    %c0_53 = arith.constant 0 : index
    %c0_54 = arith.constant 0 : index
    %154 = vector.load %arg8[%c0_52, %c0_53, %c0_54] : memref<1x128x64xbf16, #tpu.memory_space<vmem>>, vector<1x128x64xbf16>
    %155 = vector.shape_cast %154 : vector<1x128x64xbf16> to vector<128x64xbf16>
    %cst_55 = arith.constant dense<0.000000e+00> : vector<8x64xf32>
    %156 = tpu.matmul %153, %155, %cst_55 {dimension_numbers = #tpu.dot_dimension_numbers<[1], [0], [0], [1], [0, 0, 1, 1], [], []>} : vector<8x128xbf16>, vector<128x64xbf16>, vector<8x64xf32> -> vector<8x64xf32>
    %c0_56 = arith.constant 0 : index
    %c0_57 = arith.constant 0 : index
    %157 = vector.load %arg11[%c0_56, %c0_57] : memref<8x64xf32, #tpu.memory_space<vmem>>, vector<8x64xf32>
    tpu.vector_store %arg11[%c0_56, %c0_57], %156 {strides = array<i32>} : memref<8x64xf32, #tpu.memory_space<vmem>>, vector<8x64xf32>,
    %c0_58 = arith.constant 0 : index
    %c0_59 = arith.constant 0 : index
    %158 = vector.load %arg12[%c0_58, %c0_59] : memref<8x64xf32, #tpu.memory_space<vmem>>, vector<8x64xf32>
    tpu.vector_store %arg12[%c0_58, %c0_59], %133 {strides = array<i32>} : memref<8x64xf32, #tpu.memory_space<vmem>>, vector<8x64xf32>,
    %c1_i32 = arith.constant 1 : i32
    %159 = arith.cmpi eq, %arg0, %c1_i32 : i32
    %160 = arith.extui %159 : i1 to i32
    %c0_i32_60 = arith.constant 0 : i32
    %161 = arith.cmpi ne, %160, %c0_i32_60 : i32
    scf.if %161 {
      %162 = arith.addf %156, %133 : vector<8x64xf32>
      %163 = arith.mulf %162, %162 : vector<8x64xf32>
      %cst_61 = arith.constant dense<0.000000e+00> : vector<8xf32>
      %164 = vector.multi_reduction <add>, %163, %cst_61 [1] : vector<8x64xf32> to vector<8xf32>
      %165 = vector.shape_cast %164 : vector<8xf32> to vector<8x1xf32>
      %cst_62 = arith.constant 6.400000e+01 : f32
      %166 = vector.broadcast %cst_62 : f32 to vector<8x1xf32>
      %167 = arith.divf %165, %166 : vector<8x1xf32>
      %cst_63 = arith.constant 9.99999997E-7 : f32
      %168 = vector.broadcast %cst_63 : f32 to vector<8x1xf32>
      %169 = arith.addf %167, %168 : vector<8x1xf32>
      %170 = math.rsqrt %169 : vector<8x1xf32>
      %171 = vector.broadcast %170 : vector<8x1xf32> to vector<8x64xf32>
      %172 = arith.mulf %162, %171 : vector<8x64xf32>
      %c0_64 = arith.constant 0 : index
      %c0_65 = arith.constant 0 : index
      %173 = vector.load %arg9[%c0_64, %c0_65] : memref<1x64xf32, #tpu.memory_space<vmem>>, vector<1x64xf32>
      %174 = vector.broadcast %173 : vector<1x64xf32> to vector<8x64xf32>
      %175 = arith.mulf %172, %174 : vector<8x64xf32>
      %c0_66 = arith.constant 0 : index
      %c0_67 = arith.constant 0 : index
      %176 = vector.load %arg10[%c0_66, %c0_67] : memref<8x64xf32, #tpu.memory_space<vmem>>, vector<8x64xf32>
      tpu.vector_store %arg10[%c0_66, %c0_67], %175 {strides = array<i32>} : memref<8x64xf32, #tpu.memory_space<vmem>>, vector<8x64xf32>,
    } else {
    }
    return
  }
  func.func @transform_0(%arg0: i32) -> (i32, i32) {
    %c0_i32 = arith.constant 0 : i32
    %c0_i32_0 = arith.constant 0 : i32
    %c0_i32_1 = arith.constant 0 : i32
    return %c0_i32, %c0_i32_0 : i32, i32
  }
  func.func @transform_1(%arg0: i32) -> (i32, i32) {
    %c0_i32 = arith.constant 0 : i32
    %c0_i32_0 = arith.constant 0 : i32
    %c0_i32_1 = arith.constant 0 : i32
    return %c0_i32, %c0_i32_0 : i32, i32
  }
  func.func @transform_2(%arg0: i32) -> (i32, i32) {
    %c0_i32 = arith.constant 0 : i32
    %c0_i32_0 = arith.constant 0 : i32
    %c0_i32_1 = arith.constant 0 : i32
    return %c0_i32, %c0_i32_0 : i32, i32
  }
  func.func @transform_3(%arg0: i32) -> (i32, i32, i32) {
    %c0_i32 = arith.constant 0 : i32
    %c0_i32_0 = arith.constant 0 : i32
    %c0_i32_1 = arith.constant 0 : i32
    return %arg0, %c0_i32, %c0_i32_0 : i32, i32, i32
  }
  func.func @transform_4(%arg0: i32) -> (i32, i32, i32) {
    %c0_i32 = arith.constant 0 : i32
    %c0_i32_0 = arith.constant 0 : i32
    %c0_i32_1 = arith.constant 0 : i32
    return %arg0, %c0_i32, %c0_i32_0 : i32, i32, i32
  }
  func.func @transform_5(%arg0: i32) -> (i32, i32, i32) {
    %c0_i32 = arith.constant 0 : i32
    %c0_i32_0 = arith.constant 0 : i32
    %c0_i32_1 = arith.constant 0 : i32
    return %arg0, %c0_i32, %c0_i32_0 : i32, i32, i32
  }
  func.func @transform_6(%arg0: i32) -> (i32, i32, i32) {
    %c0_i32 = arith.constant 0 : i32
    %c0_i32_0 = arith.constant 0 : i32
    %c0_i32_1 = arith.constant 0 : i32
    return %arg0, %c0_i32, %c0_i32_0 : i32, i32, i32
  }
  func.func @transform_7(%arg0: i32) -> (i32, i32, i32) {
    %c0_i32 = arith.constant 0 : i32
    %c0_i32_0 = arith.constant 0 : i32
    %c0_i32_1 = arith.constant 0 : i32
    return %arg0, %c0_i32, %c0_i32_0 : i32, i32, i32
  }
  func.func @transform_8(%arg0: i32) -> (i32, i32) {
    %c0_i32 = arith.constant 0 : i32
    %c0_i32_0 = arith.constant 0 : i32
    %c0_i32_1 = arith.constant 0 : i32
    return %c0_i32, %c0_i32_0 : i32, i32
  }
  func.func @transform_9(%arg0: i32) -> (i32, i32) {
    %c0_i32 = arith.constant 0 : i32
    %c0_i32_0 = arith.constant 0 : i32
    %c0_i32_1 = arith.constant 0 : i32
    return %c0_i32, %c0_i32_0 : i32, i32
  }
}

</mosaic_0001>

<llo_original>
// kernel: tile.39
$region0: #{tile.39}
  %s0 = inlined_call_operand.vmem [shape: f32[8,2,16], index: 0, kind: input, shape index: {}]
  %s1 = inlined_call_operand.vmem [shape: f32[8,32], index: 1, kind: output, shape index: {}]
  $region1: #{tile.39} parent=0
    #allocation0 [shape = 'u8[32768]{0}', space=vmem, size = 0x8000, scoped, tag = 'scoped mem for input reshape']
    %s3 = sshll.u32 1, 2
    %s4 = ssub.s32 %s3, 1
    %s5 = smul.addr 2, 7
    %s6 = scalar_lea.vmem %s0, %s5
    %v7 = vld [vmem:[%s6] sm:%s4]
    %s8 = scalar_lea.vmem [#allocation0], 56
    %9 = vst [vmem:[%s8] sm:%s4] %v7
    %s10 = smul.addr 2, 6
    %s11 = scalar_lea.vmem %s0, %s10
    %v12 = vld [vmem:[%s11] sm:%s4]
    %s13 = scalar_lea.vmem [#allocation0], 48
    %14 = vst [vmem:[%s13] sm:%s4] %v12
    %s15 = smul.addr 2, 5
    %s16 = scalar_lea.vmem %s0, %s15
    %v17 = vld [vmem:[%s16] sm:%s4]
    %s18 = scalar_lea.vmem [#allocation0], 40
    %19 = vst [vmem:[%s18] sm:%s4] %v17
    %s20 = smul.addr 2, 4
    %s21 = scalar_lea.vmem %s0, %s20
    %v22 = vld [vmem:[%s21] sm:%s4]
    %s23 = scalar_lea.vmem [#allocation0], 32
    %24 = vst [vmem:[%s23] sm:%s4] %v22
    %s25 = smul.addr 2, 3
    %s26 = scalar_lea.vmem %s0, %s25
    %v27 = vld [vmem:[%s26] sm:%s4]
    %s28 = scalar_lea.vmem [#allocation0], 24
    %29 = vst [vmem:[%s28] sm:%s4] %v27
    %s30 = smul.addr 2, 2
    %s31 = scalar_lea.vmem %s0, %s30
    %v32 = vld [vmem:[%s31] sm:%s4]
    %s33 = scalar_lea.vmem [#allocation0], 16
    %34 = vst [vmem:[%s33] sm:%s4] %v32
    %s35 = scalar_lea.vmem %s0, 2
    %v36 = vld [vmem:[%s35] sm:%s4]
    %s37 = scalar_lea.vmem [#allocation0], 8
    %38 = vst [vmem:[%s37] sm:%s4] %v36
    %v39 = vld [vmem:[%s0] sm:%s4]
    %40 = vst [vmem:[#allocation0] sm:%s4] %v39
    %v41 = vld [vmem:[#allocation0] ss:$8 sm:$0xf]
    %v42 = vld [vmem:[#allocation0] ss:$8 sm:$0xf0]
    %vm43 = vcmask 1047556
    %v44 = vsel %vm43, %v42, %v41
    %vm45 = vcmask 130048
    %46 = vst.msk [vmem:[%s1] sm:$0xff] %vm45, %v44
    %s47 = scalar_lea.vmem [#allocation0], 1
    %v48 = vld [vmem:[%s47] ss:$8 sm:$0xf]
    %s49 = scalar_lea.vmem [#allocation0], 1
    %v50 = vld [vmem:[%s49] ss:$8 sm:$0xf0]
    %vm51 = vcmask 1047556
    %v52 = vsel %vm51, %v50, %v48
    %53 = vrot.lane.b32.xlu0 %v52, 16
    %v54 = vpop.permute.xlu0 %53
    %vm55 = vcmask 261248
    %56 = vst.msk [vmem:[%s1] sm:$0xff] %vm55, %v54

// kernel: arcee_model_forward.1
$region0: #{arcee_model_forward.1}
  #allocation0 [shape = 'u32[]', space=smem, size = 0x4, offset = 0x4, fixed_abs, tag = 'smem constant byte address 0x4 - core index']
  #allocation1 [shape = 'u32[144,128]{1,0:T(1,128)}', space=vmem, size = 0x12000, scoped, tag = 'internal scratch']
  #allocation2 [shape = 'f32[8,64]{1,0:T(8,128)}', space=vmem, size = 0x1000, scoped, tag = 'scratch operand']
  #allocation3 [shape = 'f32[8,64]{1,0:T(8,128)}', space=vmem, size = 0x1000, scoped, tag = 'scratch operand']
  %s0 = inlined_call_operand.vmem [shape: s32[8,1], index: 0, kind: input, shape index: {}]
  %s1 = inlined_call_operand.vmem [shape: f32[128,64], index: 1, kind: input, shape index: {}]
  %s2 = inlined_call_operand.vmem [shape: f32[8,192], index: 2, kind: input, shape index: {}]
  %s3 = inlined_call_operand.vmem [shape: f32[2,2,64], index: 3, kind: input, shape index: {}]
  %s4 = inlined_call_operand.vmem [shape: bf16[2,64,256], index: 4, kind: input, shape index: {}]
  %s5 = inlined_call_operand.vmem [shape: bf16[2,64,64], index: 5, kind: input, shape index: {}]
  %s6 = inlined_call_operand.vmem [shape: bf16[2,64,128], index: 6, kind: input, shape index: {}]
  %s7 = inlined_call_operand.vmem [shape: bf16[2,128,64], index: 7, kind: input, shape index: {}]
  %s8 = inlined_call_operand.vmem [shape: f32[1,64], index: 8, kind: input, shape index: {}]
  %s9 = inlined_call_operand.hbm [shape: f32[8,64], index: 9, kind: output, shape index: {}]
  %s10 = sld [smem:[#allocation0]]
  $region77: #{arcee_model_forward.1} parent=0
    _
  %s12 = ssub.s32 1, %s10
  %s13 = scalar_select 0, %s12, %s10
  $region1: #{arcee_model_forward.1} parent=0
    #allocation4 [shape = 'u8[4096]{0}', space=vmem, size = 0x1000, scoped, tag = 'output window, operand 0, single buffered']
    #allocation5 [shape = 's32[2]{0}', space=sflag, size = 0x8, scoped, tag = 'scoped memory for arcee_model_forward.1']
    %14 = vsyncpa [#allocation5], 0
    loop: start=0, step=1, limit=4
    $region2: #{arcee_model_forward.1} parent=1 // loop_pre_header
      _
    $region3: #{arcee_model_forward.1} parent=1 // loop_header
      %s16 = sphi 0, %s20
      %p17 = scmp.ge.s32.totalorder %s16, 4
      %s24 = sphi 0, %s24
      %s26 = sphi 0, %s24
      %s27 = sphi 0, %s26
      %s41 = sphi 0, %s27
      %s45 = sphi 0, %s45
      %s47 = sphi 0, %s45
      %s48 = sphi 0, %s47
      %s62 = sphi 0, %s48
      %s66 = sphi 0, %s66
      %s68 = sphi 0, %s66
      %s69 = sphi 0, %s68
      %s83 = sphi 0, %s69
      %s89 = sphi 0, %s91
      %s92 = sphi 0, %s89
      %s93 = sphi 0, %s92
      %s109 = sphi 0, %s93
      %s115 = sphi 0, %s117
      %s118 = sphi 0, %s115
      %s119 = sphi 0, %s118
      %s135 = sphi 0, %s119
      %s141 = sphi 0, %s143
      %s144 = sphi 0, %s141
      %s145 = sphi 0, %s144
      %s161 = sphi 0, %s145
      %s167 = sphi 0, %s169
      %s170 = sphi 0, %s167
      %s171 = sphi 0, %s170
      %s187 = sphi 0, %s171
      %s193 = sphi 0, %s195
      %s196 = sphi 0, %s193
      %s197 = sphi 0, %s196
      %s213 = sphi 0, %s197
      %s217 = sphi 0, %s217
      %s219 = sphi 0, %s217
      %s220 = sphi 0, %s219
      %s234 = sphi 0, %s220
      %s238 = sphi 0, %s238
      %s240 = sphi 0, %s238
      %s241 = sphi 0, %s240
      %s255 = sphi 0, %s241
    $region4: #{arcee_model_forward.1} parent=1 // loop_header_branch
      %19 = sbr.rel (%p17) target = $region8
    $region5: #{arcee_model_forward.1} parent=1 // loop_body
      %s21 = ssub.s32 %s16, 1
      %s22 = ssub.s32 %s16, 2
      %s23 = sadd.s32 %s16, 1
      %s25 = sadd.s32 %s24, 1
      %p28 = scmp.eq.s32.totalorder %s16, 1
      %p29 = scmp.ne.s32.totalorder %s24, %s26
      %p30 = scmp.eq.s32.totalorder %s16, 0
      %p31 = por %p29, %p30
      %p32 = scmp.ne.s32.totalorder %s24, %s26
      %p33 = scmp.eq.s32.totalorder %s21, 1
      %p34 = por %p32, %p33
      %p35 = scmp.ne.s32.totalorder %s26, %s27
      %p36 = scmp.eq.s32.totalorder %s21, 0
      %p37 = por %p35, %p36
      %p38 = scmp.ne.s32.totalorder %s26, %s27
      %p39 = scmp.eq.s32.totalorder %s22, 1
      %p40 = por %p38, %p39
      %p42 = scmp.ne.s32.totalorder %s27, %s41
      %p43 = scmp.eq.s32.totalorder %s22, 0
      %p44 = por %p42, %p43
      %s46 = sadd.s32 %s45, 1
      %p49 = scmp.eq.s32.totalorder %s16, 1
      %p50 = scmp.ne.s32.totalorder %s45, %s47
      %p51 = scmp.eq.s32.totalorder %s16, 0
      %p52 = por %p50, %p51
      %p53 = scmp.ne.s32.totalorder %s45, %s47
      %p54 = scmp.eq.s32.totalorder %s21, 1
      %p55 = por %p53, %p54
      %p56 = scmp.ne.s32.totalorder %s47, %s48
      %p57 = scmp.eq.s32.totalorder %s21, 0
      %p58 = por %p56, %p57
      %p59 = scmp.ne.s32.totalorder %s47, %s48
      %p60 = scmp.eq.s32.totalorder %s22, 1
      %p61 = por %p59, %p60
      %p63 = scmp.ne.s32.totalorder %s48, %s62
      %p64 = scmp.eq.s32.totalorder %s22, 0
      %p65 = por %p63, %p64
      %s67 = sadd.s32 %s66, 1
      %p70 = scmp.eq.s32.totalorder %s16, 1
      %p71 = scmp.ne.s32.totalorder %s66, %s68
      %p72 = scmp.eq.s32.totalorder %s16, 0
      %p73 = por %p71, %p72
      %p74 = scmp.ne.s32.totalorder %s66, %s68
      %p75 = scmp.eq.s32.totalorder %s21, 1
      %p76 = por %p74, %p75
      %p77 = scmp.ne.s32.totalorder %s68, %s69
      %p78 = scmp.eq.s32.totalorder %s21, 0
      %p79 = por %p77, %p78
      %p80 = scmp.ne.s32.totalorder %s68, %s69
      %p81 = scmp.eq.s32.totalorder %s22, 1
      %p82 = por %p80, %p81
      %p84 = scmp.ne.s32.totalorder %s69, %s83
      %p85 = scmp.eq.s32.totalorder %s22, 0
      %p86 = por %p84, %p85
      %s87 = ssub.s32 %s16, %s23
      %p88 = scmp.eq.s32.totalorder %s87, 0
      %s90 = sadd.s32 %s89, 1
      %s91 = scalar_select %p88, %s89, %s90
      %p94 = pneg %p88
      %p95 = scmp.eq.s32.totalorder %s16, 1
      %p96 = por %p94, %p95
      %p97 = scmp.ne.s32.totalorder %s89, %s92
      %p98 = scmp.eq.s32.totalorder %s16, 0
      %p99 = por %p97, %p98
      %p100 = scmp.ne.s32.totalorder %s89, %s92
      %p101 = scmp.eq.s32.totalorder %s21, 1
      %p102 = por %p100, %p101
      %p103 = scmp.ne.s32.totalorder %s92, %s93
      %p104 = scmp.eq.s32.totalorder %s21, 0
      %p105 = por %p103, %p104
      %p106 = scmp.ne.s32.totalorder %s92, %s93
      %p107 = scmp.eq.s32.totalorder %s22, 1
      %p108 = por %p106, %p107
      %p110 = scmp.ne.s32.totalorder %s93, %s109
      %p111 = scmp.eq.s32.totalorder %s22, 0
      %p112 = por %p110, %p111
      %s113 = ssub.s32 %s16, %s23
      %p114 = scmp.eq.s32.totalorder %s113, 0
      %s116 = sadd.s32 %s115, 1
      %s117 = scalar_select %p114, %s115, %s116
      %p120 = pneg %p114
      %p121 = scmp.eq.s32.totalorder %s16, 1
      %p122 = por %p120, %p121
      %p123 = scmp.ne.s32.totalorder %s115, %s118
      %p124 = scmp.eq.s32.totalorder %s16, 0
      %p125 = por %p123, %p124
      %p126 = scmp.ne.s32.totalorder %s115, %s118
      %p127 = scmp.eq.s32.totalorder %s21, 1
      %p128 = por %p126, %p127
      %p129 = scmp.ne.s32.totalorder %s118, %s119
      %p130 = scmp.eq.s32.totalorder %s21, 0
      %p131 = por %p129, %p130
      %p132 = scmp.ne.s32.totalorder %s118, %s119
      %p133 = scmp.eq.s32.totalorder %s22, 1
      %p134 = por %p132, %p133
      %p136 = scmp.ne.s32.totalorder %s119, %s135
      %p137 = scmp.eq.s32.totalorder %s22, 0
      %p138 = por %p136, %p137
      %s139 = ssub.s32 %s16, %s23
      %p140 = scmp.eq.s32.totalorder %s139, 0
      %s142 = sadd.s32 %s141, 1
      %s143 = scalar_select %p140, %s141, %s142
      %p146 = pneg %p140
      %p147 = scmp.eq.s32.totalorder %s16, 1
      %p148 = por %p146, %p147
      %p149 = scmp.ne.s32.totalorder %s141, %s144
      %p150 = scmp.eq.s32.totalorder %s16, 0
      %p151 = por %p149, %p150
      %p152 = scmp.ne.s32.totalorder %s141, %s144
      %p153 = scmp.eq.s32.totalorder %s21, 1
      %p154 = por %p152, %p153
      %p155 = scmp.ne.s32.totalorder %s144, %s145
      %p156 = scmp.eq.s32.totalorder %s21, 0
      %p157 = por %p155, %p156
      %p158 = scmp.ne.s32.totalorder %s144, %s145
      %p159 = scmp.eq.s32.totalorder %s22, 1
      %p160 = por %p158, %p159
      %p162 = scmp.ne.s32.totalorder %s145, %s161
      %p163 = scmp.eq.s32.totalorder %s22, 0
      %p164 = por %p162, %p163
      %s165 = ssub.s32 %s16, %s23
      %p166 = scmp.eq.s32.totalorder %s165, 0
      %s168 = sadd.s32 %s167, 1
      %s169 = scalar_select %p166, %s167, %s168
      %p172 = pneg %p166
      %p173 = scmp.eq.s32.totalorder %s16, 1
      %p174 = por %p172, %p173
      %p175 = scmp.ne.s32.totalorder %s167, %s170
      %p176 = scmp.eq.s32.totalorder %s16, 0
      %p177 = por %p175, %p176
      %p178 = scmp.ne.s32.totalorder %s167, %s170
      %p179 = scmp.eq.s32.totalorder %s21, 1
      %p180 = por %p178, %p179
      %p181 = scmp.ne.s32.totalorder %s170, %s171
      %p182 = scmp.eq.s32.totalorder %s21, 0
      %p183 = por %p181, %p182
      %p184 = scmp.ne.s32.totalorder %s170, %s171
      %p185 = scmp.eq.s32.totalorder %s22, 1
      %p186 = por %p184, %p185
      %p188 = scmp.ne.s32.totalorder %s171, %s187
      %p189 = scmp.eq.s32.totalorder %s22, 0
      %p190 = por %p188, %p189
      %s191 = ssub.s32 %s16, %s23
      %p192 = scmp.eq.s32.totalorder %s191, 0
      %s194 = sadd.s32 %s193, 1
      %s195 = scalar_select %p192, %s193, %s194
      %p198 = pneg %p192
      %p199 = scmp.eq.s32.totalorder %s16, 1
      %p200 = por %p198, %p199
      %p201 = scmp.ne.s32.totalorder %s193, %s196
      %p202 = scmp.eq.s32.totalorder %s16, 0
      %p203 = por %p201, %p202
      %p204 = scmp.ne.s32.totalorder %s193, %s196
      %p205 = scmp.eq.s32.totalorder %s21, 1
      %p206 = por %p204, %p205
      %p207 = scmp.ne.s32.totalorder %s196, %s197
      %p208 = scmp.eq.s32.totalorder %s21, 0
      %p209 = por %p207, %p208
      %p210 = scmp.ne.s32.totalorder %s196, %s197
      %p211 = scmp.eq.s32.totalorder %s22, 1
      %p212 = por %p210, %p211
      %p214 = scmp.ne.s32.totalorder %s197, %s213
      %p215 = scmp.eq.s32.totalorder %s22, 0
      %p216 = por %p214, %p215
      %s218 = sadd.s32 %s217, 1
      %p221 = scmp.eq.s32.totalorder %s16, 1
      %p222 = scmp.ne.s32.totalorder %s217, %s219
      %p223 = scmp.eq.s32.totalorder %s16, 0
      %p224 = por %p222, %p223
      %p225 = scmp.ne.s32.totalorder %s217, %s219
      %p226 = scmp.eq.s32.totalorder %s21, 1
      %p227 = por %p225, %p226
      %p228 = scmp.ne.s32.totalorder %s219, %s220
      %p229 = scmp.eq.s32.totalorder %s21, 0
      %p230 = por %p228, %p229
      %p231 = scmp.ne.s32.totalorder %s219, %s220
      %p232 = scmp.eq.s32.totalorder %s22, 1
      %p233 = por %p231, %p232
      %p235 = scmp.ne.s32.totalorder %s220, %s234
      %p236 = scmp.eq.s32.totalorder %s22, 0
      %p237 = por %p235, %p236
      %s239 = sadd.s32 %s238, 1
      %p242 = scmp.eq.s32.totalorder %s16, 1
      %p243 = scmp.ne.s32.totalorder %s238, %s240
      %p244 = scmp.eq.s32.totalorder %s16, 0
      %p245 = por %p243, %p244
      %p246 = scmp.ne.s32.totalorder %s238, %s240
      %p247 = scmp.eq.s32.totalorder %s21, 1
      %p248 = por %p246, %p247
      %p249 = scmp.ne.s32.totalorder %s240, %s241
      %p250 = scmp.eq.s32.totalorder %s21, 0
      %p251 = por %p249, %p250
      %p252 = scmp.ne.s32.totalorder %s240, %s241
      %p253 = scmp.eq.s32.totalorder %s22, 1
      %p254 = por %p252, %p253
      %p256 = scmp.ne.s32.totalorder %s241, %s255
      %p257 = scmp.eq.s32.totalorder %s22, 0
      %p258 = por %p256, %p257
      %p259 = scmp.le.s32.totalorder 1, %s16
      %p260 = scmp.lt.s32.totalorder %s16, 3
      %p261 = pnand %p259, %p260
      %p262 = pneg %p261
      // Predicated region
      $region9: #{arcee_model_forward.1} parent=5 // pred_check
        _
      $region10: #{arcee_model_forward.1} parent=5 // pred_check_branch
        %264 = sbr.rel (%p261) target = $region12
      $region11: #{arcee_model_forward.1} parent=5 // pred_region
        %s265 = ssub.s32 %s16, 1
        // Predicated region
        $region13: #{arcee_model_forward.1} parent=11 // pred_check
          %p266 = pneg %p37
        $region14: #{arcee_model_forward.1} parent=11 // pred_check_branch
          %268 = sbr.rel (%p266) target = $region16
        $region15: #{arcee_model_forward.1} parent=11 // pred_region
          _
        $region16: #{arcee_model_forward.1} parent=11 // pred_fallthru
          _
        // Predicated region
        $region17: #{arcee_model_forward.1} parent=11 // pred_check
          %p269 = pneg %p58
        $region18: #{arcee_model_forward.1} parent=11 // pred_check_branch
          %271 = sbr.rel (%p269) target = $region20
        $region19: #{arcee_model_forward.1} parent=11 // pred_region
          _
        $region20: #{arcee_model_forward.1} parent=11 // pred_fallthru
          _
        // Predicated region
        $region21: #{arcee_model_forward.1} parent=11 // pred_check
          %p272 = pneg %p79
        $region22: #{arcee_model_forward.1} parent=11 // pred_check_branch
          %274 = sbr.rel (%p272) target = $region24
        $region23: #{arcee_model_forward.1} parent=11 // pred_region
          _
        $region24: #{arcee_model_forward.1} parent=11 // pred_fallthru
          _
        // Predicated region
        $region25: #{arcee_model_forward.1} parent=11 // pred_check
          %p275 = pneg %p230
        $region26: #{arcee_model_forward.1} parent=11 // pred_check_branch
          %277 = sbr.rel (%p275) target = $region28
        $region27: #{arcee_model_forward.1} parent=11 // pred_region
          _
        $region28: #{arcee_model_forward.1} parent=11 // pred_fallthru
          _
      $region12: #{arcee_model_forward.1} parent=5 // pred_fallthru
        _
      %p278 = scmp.lt.s32.totalorder %s16, 2
      // Predicated region
      $region29: #{arcee_model_forward.1} parent=5 // pred_check
        %p279 = pneg %p278
      $region30: #{arcee_model_forward.1} parent=5 // pred_check_branch
        %281 = sbr.rel (%p279) target = $region32
      $region31: #{arcee_model_forward.1} parent=5 // pred_region
        // Predicated region
        $region33: #{arcee_model_forward.1} parent=31 // pred_check
          %p282 = pneg %p99
        $region34: #{arcee_model_forward.1} parent=31 // pred_check_branch
          %284 = sbr.rel (%p282) target = $region36
        $region35: #{arcee_model_forward.1} parent=31 // pred_region
          %p285 = scmp.lt.s32.totalorder %s16, 1
          %s286 = scalar_select %p285, %s16, 1
          %s287 = smul.addr %s286, 2
          %s288 = scalar_lea.vmem %s3, %s287
        $region36: #{arcee_model_forward.1} parent=31 // pred_fallthru
          _
        // Predicated region
        $region37: #{arcee_model_forward.1} parent=31 // pred_check
          %p289 = pneg %p125
        $region38: #{arcee_model_forward.1} parent=31 // pred_check_branch
          %291 = sbr.rel (%p289) target = $region40
        $region39: #{arcee_model_forward.1} parent=31 // pred_region
          %p292 = scmp.lt.s32.totalorder %s16, 1
          %s293 = scalar_select %p292, %s16, 1
          %s294 = smul.addr %s293, 16
          %s295 = smul.addr %s294, 4
          %s296 = scalar_lea.vmem %s4, %s295
        $region40: #{arcee_model_forward.1} parent=31 // pred_fallthru
          _
        // Predicated region
        $region41: #{arcee_model_forward.1} parent=31 // pred_check
          %p297 = pneg %p151
        $region42: #{arcee_model_forward.1} parent=31 // pred_check_branch
          %299 = sbr.rel (%p297) target = $region44
        $region43: #{arcee_model_forward.1} parent=31 // pred_region
          %p300 = scmp.lt.s32.totalorder %s16, 1
          %s301 = scalar_select %p300, %s16, 1
          %s302 = smul.addr %s301, 8
          %s303 = smul.addr %s302, 4
          %s304 = scalar_lea.vmem %s5, %s303
        $region44: #{arcee_model_forward.1} parent=31 // pred_fallthru
          _
        // Predicated region
        $region45: #{arcee_model_forward.1} parent=31 // pred_check
          %p305 = pneg %p177
        $region46: #{arcee_model_forward.1} parent=31 // pred_check_branch
          %307 = sbr.rel (%p305) target = $region48
        $region47: #{arcee_model_forward.1} parent=31 // pred_region
          %p308 = scmp.lt.s32.totalorder %s16, 1
          %s309 = scalar_select %p308, %s16, 1
          %s310 = smul.addr %s309, 8
          %s311 = smul.addr %s310, 4
          %s312 = scalar_lea.vmem %s6, %s311
        $region48: #{arcee_model_forward.1} parent=31 // pred_fallthru
          _
        // Predicated region
        $region49: #{arcee_model_forward.1} parent=31 // pred_check
          %p313 = pneg %p203
        $region50: #{arcee_model_forward.1} parent=31 // pred_check_branch
          %315 = sbr.rel (%p313) target = $region52
        $region51: #{arcee_model_forward.1} parent=31 // pred_region
          %p316 = scmp.lt.s32.totalorder %s16, 1
          %s317 = scalar_select %p316, %s16, 1
          %s318 = smul.addr %s317, 16
          %s319 = smul.addr %s318, 4
          %s320 = scalar_lea.vmem %s7, %s319
        $region52: #{arcee_model_forward.1} parent=31 // pred_fallthru
          _
      $region32: #{arcee_model_forward.1} parent=5 // pred_fallthru
        _
      %p321 = scmp.le.s32.totalorder 1, %s16
      %p322 = scmp.lt.s32.totalorder %s16, 3
      %p323 = pnand %p321, %p322
      %p324 = pneg %p323
      // Predicated region
      $region53: #{arcee_model_forward.1} parent=5 // pred_check
        _
      $region54: #{arcee_model_forward.1} parent=5 // pred_check_branch
        %326 = sbr.rel (%p323) target = $region56
      $region55: #{arcee_model_forward.1} parent=5 // pred_region
        %s327 = ssub.s32 %s16, 1
        %p328 = pneg %p37
        %p329 = pneg %p34
        %p330 = pneg %p58
        %p331 = pneg %p55
        %p332 = pneg %p79
        %p333 = pneg %p76
        %p334 = scmp.lt.s32.totalorder %s21, 1
        %s335 = scalar_select %p334, %s21, 1
        %s336 = smul.addr %s335, 2
        %s337 = scalar_lea.vmem %s3, %s336
        %p338 = pneg %p105
        %p339 = pneg %p102
        %p340 = scmp.lt.s32.totalorder %s21, 1
        %s341 = scalar_select %p340, %s21, 1
        %s342 = smul.addr %s341, 16
        %s343 = smul.addr %s342, 4
        %s344 = scalar_lea.vmem %s4, %s343
        %p345 = pneg %p131
        %p346 = pneg %p128
        %p347 = scmp.lt.s32.totalorder %s21, 1
        %s348 = scalar_select %p347, %s21, 1
        %s349 = smul.addr %s348, 8
        %s350 = smul.addr %s349, 4
        %s351 = scalar_lea.vmem %s5, %s350
        %p352 = pneg %p157
        %p353 = pneg %p154
        %p354 = scmp.lt.s32.totalorder %s21, 1
        %s355 = scalar_select %p354, %s21, 1
        %s356 = smul.addr %s355, 8
        %s357 = smul.addr %s356, 4
        %s358 = scalar_lea.vmem %s6, %s357
        %p359 = pneg %p183
        %p360 = pneg %p180
        %p361 = scmp.lt.s32.totalorder %s21, 1
        %s362 = scalar_select %p361, %s21, 1
        %s363 = smul.addr %s362, 16
        %s364 = smul.addr %s363, 4
        %s365 = scalar_lea.vmem %s7, %s364
        %p366 = pneg %p209
        %p367 = pneg %p206
        %p368 = pneg %p230
        %p369 = pneg %p227
        %p370 = pneg %p251
        %p371 = pneg %p248
        %p372 = scmp.lt.s32.totalorder %s21, 1
        %s373 = scalar_select %p372, %s21, 1
        %s374 = smul.addr %s373, 2
        %s375 = scalar_lea.vmem %s3, %s374
        %p376 = scmp.lt.s32.totalorder %s21, 1
        %s377 = scalar_select %p376, %s21, 1
        %s378 = smul.addr %s377, 16
        %s379 = smul.addr %s378, 4
        %s380 = scalar_lea.vmem %s4, %s379
        %p381 = scmp.lt.s32.totalorder %s21, 1
        %s382 = scalar_select %p381, %s21, 1
        %s383 = smul.addr %s382, 8
        %s384 = smul.addr %s383, 4
        %s385 = scalar_lea.vmem %s5, %s384
        %p386 = scmp.lt.s32.totalorder %s21, 1
        %s387 = scalar_select %p386, %s21, 1
        %s388 = smul.addr %s387, 8
        %s389 = smul.addr %s388, 4
        %s390 = scalar_lea.vmem %s6, %s389
        %p391 = scmp.lt.s32.totalorder %s21, 1
        %s392 = scalar_select %p391, %s21, 1
        %s393 = smul.addr %s392, 16
        %s394 = smul.addr %s393, 4
        %s395 = scalar_lea.vmem %s7, %s394
        %p397 = scmp.eq.s32.totalorder %s21, 0
        // Predicated region
        $region57: #{arcee_model_forward.1} parent=55 // pred_check
          %p398 = pneg %p397
        $region58: #{arcee_model_forward.1} parent=55 // pred_check_branch
          %400 = sbr.rel (%p398) target = $region60
        $region59: #{arcee_model_forward.1} parent=55 // pred_region
          %v401 = vld [vmem:[%s0] sm:$0xff]
          %v402 = vlaneseq
          %v403 = vand.u32 %v402, 127
          %404 = vset.pattern.permute.xlu0 0
          %405 = vperm.xlu0 %404, %v401
          %v406 = vpop.permute.xlu0 %405
          %vm407 = vcmp.eq.s32.totalorder %v406, %v403
          %v408 = vsel %vm407, 1, 0
          %v409 = vcvt.s32.f32 %v408
          %v410 = vld [vmem:[%s1] sm:$0xff]
          %v411 = vld [vmem:[%s1 + $0x8] sm:$0xff]
          %v412 = vld [vmem:[%s1 + $0x10] sm:$0xff]
          %v413 = vld [vmem:[%s1 + $0x18] sm:$0xff]
          %v414 = vld [vmem:[%s1 + $0x20] sm:$0xff]
          %v415 = vld [vmem:[%s1 + $0x28] sm:$0xff]
          %v416 = vld [vmem:[%s1 + $0x30] sm:$0xff]
          %v417 = vld [vmem:[%s1 + $0x38] sm:$0xff]
          %v418 = vld [vmem:[%s1 + $0x40] sm:$0xff]
          %v419 = vld [vmem:[%s1 + $0x48] sm:$0xff]
          %v420 = vld [vmem:[%s1 + $0x50] sm:$0xff]
          %v421 = vld [vmem:[%s1 + $0x58] sm:$0xff]
          %v422 = vld [vmem:[%s1 + $0x60] sm:$0xff]
          %v423 = vld [vmem:[%s1 + $0x68] sm:$0xff]
          %v424 = vld [vmem:[%s1 + $0x70] sm:$0xff]
          %v425 = vld [vmem:[%s1 + $0x78] sm:$0xff]
          %426 = vmatprep.subr.mxu0 0.0
          %427 = vmatpush1.msra.mxu0 %v425
          %428 = vmatprep.subr.mxu0 0.0
          %429 = vmatpush1.msra.mxu0 %v424
          %430 = vmatprep.subr.mxu0 0.0
          %431 = vmatpush1.msra.mxu0 %v423
          %432 = vmatprep.subr.mxu0 0.0
          %433 = vmatpush1.msra.mxu0 %v422
          %434 = vmatprep.subr.mxu0 0.0
          %435 = vmatpush1.msra.mxu0 %v421
          %436 = vmatprep.subr.mxu0 0.0
          %437 = vmatpush1.msra.mxu0 %v420
          %438 = vmatprep.subr.mxu0 0.0
          %439 = vmatpush1.msra.mxu0 %v419
          %440 = vmatprep.subr.mxu0 0.0
          %441 = vmatpush1.msra.mxu0 %v418
          %442 = vmatprep.subr.mxu0 0.0
          %443 = vmatpush1.msra.mxu0 %v417
          %444 = vmatprep.subr.mxu0 0.0
          %445 = vmatpush1.msra.mxu0 %v416
          %446 = vmatprep.subr.mxu0 0.0
          %447 = vmatpush1.msra.mxu0 %v415
          %448 = vmatprep.subr.mxu0 0.0
          %449 = vmatpush1.msra.mxu0 %v414
          %450 = vmatprep.subr.mxu0 0.0
          %451 = vmatpush1.msra.mxu0 %v413
          %452 = vmatprep.subr.mxu0 0.0
          %453 = vmatpush1.msra.mxu0 %v412
          %454 = vmatprep.subr.mxu0 0.0
          %455 = vmatpush1.msra.mxu0 %v411
          %456 = vmatprep.subr.mxu0 0.0
          %457 = vmatpush1.msra.mxu0 %v410
          %458 = vmatprep.subr.mxu0 0.0
          %459 = vmatpush2.msra.mxu0 0.0
          %460 = vmatprep.subr.mxu0 0.0
          %461 = vmatpush2.msra.mxu0 0.0
          %462 = vmatprep.subr.mxu0 0.0
          %463 = vmatpush2.msra.mxu0 0.0
          %464 = vmatprep.subr.mxu0 0.0
          %465 = vmatpush2.msra.mxu0 0.0
          %466 = vmatprep.subr.mxu0 0.0
          %467 = vmatpush2.msra.mxu0 0.0
          %468 = vmatprep.subr.mxu0 0.0
          %469 = vmatpush2.msra.mxu0 0.0
          %470 = vmatprep.subr.mxu0 0.0
          %471 = vmatpush2.msra.mxu0 0.0
          %472 = vmatprep.subr.mxu0 0.0
          %473 = vmatpush2.msra.mxu0 0.0
          %474 = vmatprep.subr.mxu0 0.0
          %475 = vmatpush2.msra.mxu0 0.0
          %476 = vmatprep.subr.mxu0 0.0
          %477 = vmatpush2.msra.mxu0 0.0
          %478 = vmatprep.subr.mxu0 0.0
          %479 = vmatpush2.msra.mxu0 0.0
          %480 = vmatprep.subr.mxu0 0.0
          %481 = vmatpush2.msra.mxu0 0.0
          %482 = vmatprep.subr.mxu0 0.0
          %483 = vmatpush2.msra.mxu0 0.0
          %484 = vmatprep.subr.mxu0 0.0
          %485 = vmatpush2.msra.mxu0 0.0
          %486 = vmatprep.subr.mxu0 0.0
          %487 = vmatpush2.msra.mxu0 0.0
          %488 = vmatprep.subr.mxu0 0.0
          %489 = vmatpush2.msra.mxu0 0.0
          %490 = vmatprep.mubr.f32.mxu0 0.0
          %491 = vmatmul.mubr.f32.gmra.mxu0 %v409
          %v492 = vpop.f32.mrf.mxu0
          %v493 = vadd.f32 0.0, %v492
          %v494 = vpop.f32.mrf.mxu0
          %495 = vdwg.mxu0
          %vm496 = vcmask 523264
          %497 = vst.msk [vmem:[#allocation2] sm:$0xff] %vm496, %v493
          %498 = vst.msk [vmem:[#allocation3] sm:$0xff] %vm496, 0.0
        $region60: #{arcee_model_forward.1} parent=55 // pred_fallthru
          _
        %v499 = vld [vmem:[#allocation2] sm:$0xff]
        %v500 = vld [vmem:[#allocation3] sm:$0xff]
        %v501 = vadd.f32 %v499, %v500
        %v502 = vld [vmem:[%s375] sm:$0x3]
        %v503 = vmul.f32 %v501, %v501
        %vm504 = vcmask 523264
        %v505 = vsel %vm504, %v503, 0.0
        %506 = vadd.xlane.f32.xlu0 %v505
        %v507 = vpop.xlane.xlu0 %506
        %v508 = vrcp.pop 64.0
        %v509 = vmul.f32 %v507, %v508
        %v510 = vadd.f32 %v509, 1e-06
        %v511 = vrsqrt.pop %v510
        %v512 = vmul.f32 %v501, %v511
        %v513 = vlaneseq
        %v514 = vshrl.u32 %v513, 7
        %v515 = vsub.s32 0, %v514
        %v516 = vrot.slane %v502, %v515
        %v517 = vmul.f32 %v512, %v516
        %v518 = vpack.c.bf16 %v517, %v517
        %v519 = vld [vmem:[%s380] sm:$0xff]
        %v520 = vld [vmem:[%s380 + $0x8] sm:$0xff]
        %v521 = vld [vmem:[%s380 + $0x10] sm:$0xff]
        %v522 = vld [vmem:[%s380 + $0x18] sm:$0xff]
        %v523 = vld [vmem:[%s380 + $0x20] sm:$0xff]
        %v524 = vld [vmem:[%s380 + $0x28] sm:$0xff]
        %v525 = vld [vmem:[%s380 + $0x30] sm:$0xff]
        %v526 = vld [vmem:[%s380 + $0x38] sm:$0xff]
        %v535 = vunpack.c.l.b16 %v519
        %v536 = vunpack.c.h.b16 %v519
        %v537 = vunpack.c.l.b16 %v520
        %v538 = vunpack.c.h.b16 %v520
        %v539 = vunpack.c.l.b16 %v521
        %v540 = vunpack.c.h.b16 %v521
        %v541 = vunpack.c.l.b16 %v522
        %v542 = vunpack.c.h.b16 %v522
        %v543 = vunpack.c.l.b16 %v523
        %v544 = vunpack.c.h.b16 %v523
        %v545 = vunpack.c.l.b16 %v524
        %v546 = vunpack.c.h.b16 %v524
        %v547 = vunpack.c.l.b16 %v525
        %v548 = vunpack.c.h.b16 %v525
        %v549 = vunpack.c.l.b16 %v526
        %v550 = vunpack.c.h.b16 %v526
        %v551 = vpack.c.b16 %v537, %v535
        %v552 = vpack.c.b16 %v538, %v536
        %v553 = vpack.c.b16 %v541, %v539
        %v554 = vpack.c.b16 %v542, %v540
        %v555 = vpack.c.b16 %v545, %v543
        %v556 = vpack.c.b16 %v546, %v544
        %v557 = vpack.c.b16 %v549, %v547
        %v558 = vpack.c.b16 %v550, %v548
        %v568 = vsel %vm504, %v518, 0
        %570 = vmatprep.subr.bf16.mxu0 0
        %571 = vmatpush1.bf16.msra.mxu0 0
        %572 = vmatprep.subr.bf16.mxu0 0
        %573 = vmatpush1.bf16.msra.mxu0 0
        %574 = vmatprep.subr.bf16.mxu0 0
        %575 = vmatpush1.bf16.msra.mxu0 0
        %576 = vmatprep.subr.bf16.mxu0 0
        %577 = vmatpush1.bf16.msra.mxu0 0
        %578 = vmatprep.subr.bf16.mxu0 %v558
        %579 = vmatpush1.bf16.msra.mxu0 %v557
        %580 = vmatprep.subr.bf16.mxu0 %v556
        %581 = vmatpush1.bf16.msra.mxu0 %v555
        %582 = vmatprep.subr.bf16.mxu0 %v554
        %583 = vmatpush1.bf16.msra.mxu0 %v553
        %584 = vmatprep.subr.bf16.mxu0 %v552
        %585 = vmatpush1.bf16.msra.mxu0 %v551
        %586 = vmatprep.subr.bf16.mxu0 0
        %587 = vmatpush2.bf16.msra.mxu0 0
        %588 = vmatprep.subr.bf16.mxu0 0
        %589 = vmatpush2.bf16.msra.mxu0 0
        %590 = vmatprep.subr.bf16.mxu0 0
        %591 = vmatpush2.bf16.msra.mxu0 0
        %592 = vmatprep.subr.bf16.mxu0 0
        %593 = vmatpush2.bf16.msra.mxu0 0
        %594 = vmatprep.subr.bf16.mxu0 0
        %595 = vmatpush2.bf16.msra.mxu0 0
        %596 = vmatprep.subr.bf16.mxu0 0
        %597 = vmatpush2.bf16.msra.mxu0 0
        %598 = vmatprep.subr.bf16.mxu0 0
        %599 = vmatpush2.bf16.msra.mxu0 0
        %600 = vmatprep.subr.bf16.mxu0 0
        %601 = vmatpush2.bf16.msra.mxu0 0
        %602 = vmatprep.mubr.bf16.mxu0 0
        %603 = vmatmul.mubr.bf16.gmra.mxu0 %v568
        %v604 = vpop.f32.mrf.mxu0
        %v605 = vadd.f32 0.0, %v604
        %v606 = vpop.f32.mrf.mxu0
        %v607 = vadd.f32 0.0, %v606
        %v608 = vpop.f32.mrf.mxu0
        %v609 = vpop.f32.mrf.mxu0
        %610 = vdwg.mxu0
        %v611 = vld [vmem:[%s2] sm:$0xff]
        %v612 = vld [vmem:[%s2 + $0x8] sm:$0xff]
        %v613 = vmul.f32 %v605, %v611
        %616 = vrot.lane.b32.xlu0 %v611, 32
        %v617 = vpop.permute.xlu0 %616
        %618 = vrot.lane.b32.xlu0 %v612, 32
        %v619 = vpop.permute.xlu0 %618
        %vm620 = vcmask 261120
        %v621 = vsel %vm620, %v617, %v619
        %v623 = vmul.f32 %v607, %v621
        %v624 = vadd.f32 %v613, %v623
        %v625 = vlaneseq
        %v626 = vshrl.u32 %v625, 7
        %v627 = vlaneseq
        %v628 = vand.u32 %v627, 127
        %vm629 = vcmp.le.s32.totalorder %v628, %v626
        %v630 = vpack.c.bf16 %v624, %v624
        %v631 = vpack.c.bf16 %v605, %v605
        %v632 = vld [vmem:[%s385] sm:$0xf]
        %v633 = vld [vmem:[%s385 + $0x4] sm:$0xf]
        %v634 = vld [vmem:[%s385 + $0x8] sm:$0xf]
        %v635 = vld [vmem:[%s385 + $0xc] sm:$0xf]
        %v636 = vld [vmem:[%s385 + $0x10] sm:$0xf]
        %v637 = vld [vmem:[%s385 + $0x14] sm:$0xf]
        %v638 = vld [vmem:[%s385 + $0x18] sm:$0xf]
        %v639 = vld [vmem:[%s385 + $0x1c] sm:$0xf]
        %641 = vrot.lane.b32.xlu0 %v630, 64
        %v642 = vpop.permute.xlu0 %641
        %vm643 = vcmask 130048
        %v645 = vsel %vm643, %v630, 0
        %v648 = vsel %vm643, %v642, 0
        %650 = vmatprep.subr.bf16.mxu0 0
        %651 = vmatpush1.bf16.xpose.msra.mxu0 0
        %652 = vmatprep.subr.bf16.mxu0 0
        %653 = vmatpush1.bf16.xpose.msra.mxu0 0
        %654 = vmatprep.subr.bf16.mxu0 0
        %655 = vmatpush1.bf16.xpose.msra.mxu0 0
        %656 = vmatprep.subr.bf16.mxu0 0
        %657 = vmatpush1.bf16.xpose.msra.mxu0 0
        %658 = vmatprep.subr.bf16.mxu0 0
        %659 = vmatpush1.bf16.xpose.msra.mxu0 0
        %660 = vmatprep.subr.bf16.mxu0 0
        %661 = vmatpush1.bf16.xpose.msra.mxu0 0
        %662 = vmatprep.subr.bf16.mxu0 0
        %663 = vmatpush1.bf16.xpose.msra.mxu0 0
        %664 = vmatprep.subr.bf16.mxu0 0
        %665 = vmatpush1.bf16.xpose.msra.mxu0 %v648
        %666 = vmatprep.subr.bf16.mxu0 0
        %667 = vmatpush2.bf16.xpose.msra.mxu0 0
        %668 = vmatprep.subr.bf16.mxu0 0
        %669 = vmatpush2.bf16.xpose.msra.mxu0 0
        %670 = vmatprep.subr.bf16.mxu0 0
        %671 = vmatpush2.bf16.xpose.msra.mxu0 0
        %672 = vmatprep.subr.bf16.mxu0 0
        %673 = vmatpush2.bf16.xpose.msra.mxu0 0
        %674 = vmatprep.subr.bf16.mxu0 0
        %675 = vmatpush2.bf16.xpose.msra.mxu0 0
        %676 = vmatprep.subr.bf16.mxu0 0
        %677 = vmatpush2.bf16.xpose.msra.mxu0 0
        %678 = vmatprep.subr.bf16.mxu0 0
        %679 = vmatpush2.bf16.xpose.msra.mxu0 0
        %680 = vmatprep.subr.bf16.mxu0 0
        %681 = vmatpush2.bf16.xpose.msra.mxu0 0
        %682 = vmatprep.mubr.bf16.mxu0 0
        %683 = vmatmul.mubr.bf16.gmra.mxu0 %v645
        %v684 = vpop.f32.mrf.mxu0
        %v685 = vadd.f32 0.0, %v684
        %v686 = vpop.f32.mrf.mxu0
        %v687 = vpop.f32.mrf.mxu0
        %v688 = vpop.f32.mrf.mxu0
        %689 = vdwg.mxu0
        %v690 = vsel %vm629, %v685, -1e+30
        %vm691 = vcmask 64512
        %v692 = vsel %vm691, %v690, -inf
        %693 = vmax.xlane.f32.xlu0 %v692
        %v694 = vpop.xlane.xlu0 %693
        %v695 = vsub.f32 %v690, %v694
        %v696 = vmul.f32 %v695, 1.442695
        %v697 = vpow.pop %v696
        %v698 = vsel %vm691, %v697, 0.0
        %699 = vadd.xlane.f32.xlu0 %v698
        %v700 = vpop.xlane.xlu0 %699
        %v701 = vrcp.pop %v700
        %v702 = vmul.f32 %v697, %v701
        %v703 = vpack.c.bf16 %v702, %v702
        %705 = vrot.lane.b32.xlu0 %v631, 32
        %v706 = vpop.permute.xlu0 %705
        %v708 = vsel %vm691, %v703, 0
        %vm710 = vcmask 1043456
        %v712 = vsel %vm710, %v706, 0
        %714 = vmatprep.subr.bf16.mxu0 0
        %715 = vmatpush1.bf16.msra.mxu0 0
        %716 = vmatprep.subr.bf16.mxu0 0
        %717 = vmatpush1.bf16.msra.mxu0 0
        %718 = vmatprep.subr.bf16.mxu0 0
        %719 = vmatpush1.bf16.msra.mxu0 0
        %720 = vmatprep.subr.bf16.mxu0 0
        %721 = vmatpush1.bf16.msra.mxu0 0
        %722 = vmatprep.subr.bf16.mxu0 0
        %723 = vmatpush1.bf16.msra.mxu0 0
        %724 = vmatprep.subr.bf16.mxu0 0
        %725 = vmatpush1.bf16.msra.mxu0 0
        %726 = vmatprep.subr.bf16.mxu0 0
        %727 = vmatpush1.bf16.msra.mxu0 0
        %728 = vmatprep.subr.bf16.mxu0 0
        %729 = vmatpush1.bf16.msra.mxu0 %v712
        %730 = vmatprep.subr.bf16.mxu0 0
        %731 = vmatpush2.bf16.msra.mxu0 0
        %732 = vmatprep.subr.bf16.mxu0 0
        %733 = vmatpush2.bf16.msra.mxu0 0
        %734 = vmatprep.subr.bf16.mxu0 0
        %735 = vmatpush2.bf16.msra.mxu0 0
        %736 = vmatprep.subr.bf16.mxu0 0
        %737 = vmatpush2.bf16.msra.mxu0 0
        %738 = vmatprep.subr.bf16.mxu0 0
        %739 = vmatpush2.bf16.msra.mxu0 0
        %740 = vmatprep.subr.bf16.mxu0 0
        %741 = vmatpush2.bf16.msra.mxu0 0
        %742 = vmatprep.subr.bf16.mxu0 0
        %743 = vmatpush2.bf16.msra.mxu0 0
        %744 = vmatprep.subr.bf16.mxu0 0
        %745 = vmatpush2.bf16.msra.mxu0 0
        %746 = vmatprep.mubr.bf16.mxu0 0
        %747 = vmatmul.mubr.bf16.gmra.mxu0 %v708
        %v748 = vpop.f32.mrf.mxu0
        %v749 = vadd.f32 0.0, %v748
        %v750 = vpop.f32.mrf.mxu0
        %v751 = vpop.f32.mrf.mxu0
        %v752 = vpop.f32.mrf.mxu0
        %753 = vdwg.mxu0
        %v754 = vpack.c.bf16 %v749, %v749
        %755 = vrot.lane.b32.xlu0 %v630, 112
        %v756 = vpop.permute.xlu0 %755
        %v758 = vsel %vm643, %v756, 0
        %760 = vmatprep.subr.bf16.mxu0 0
        %761 = vmatpush1.bf16.xpose.msra.mxu0 0
        %762 = vmatprep.subr.bf16.mxu0 0
        %763 = vmatpush1.bf16.xpose.msra.mxu0 0
        %764 = vmatprep.subr.bf16.mxu0 0
        %765 = vmatpush1.bf16.xpose.msra.mxu0 0
        %766 = vmatprep.subr.bf16.mxu0 0
        %767 = vmatpush1.bf16.xpose.msra.mxu0 0
        %768 = vmatprep.subr.bf16.mxu0 0
        %769 = vmatpush1.bf16.xpose.msra.mxu0 0
        %770 = vmatprep.subr.bf16.mxu0 0
        %771 = vmatpush1.bf16.xpose.msra.mxu0 0
        %772 = vmatprep.subr.bf16.mxu0 0
        %773 = vmatpush1.bf16.xpose.msra.mxu0 0
        %774 = vmatprep.subr.bf16.mxu0 0
        %775 = vmatpush1.bf16.xpose.msra.mxu0 %v648
        %776 = vmatprep.subr.bf16.mxu0 0
        %777 = vmatpush2.bf16.xpose.msra.mxu0 0
        %778 = vmatprep.subr.bf16.mxu0 0
        %779 = vmatpush2.bf16.xpose.msra.mxu0 0
        %780 = vmatprep.subr.bf16.mxu0 0
        %781 = vmatpush2.bf16.xpose.msra.mxu0 0
        %782 = vmatprep.subr.bf16.mxu0 0
        %783 = vmatpush2.bf16.xpose.msra.mxu0 0
        %784 = vmatprep.subr.bf16.mxu0 0
        %785 = vmatpush2.bf16.xpose.msra.mxu0 0
        %786 = vmatprep.subr.bf16.mxu0 0
        %787 = vmatpush2.bf16.xpose.msra.mxu0 0
        %788 = vmatprep.subr.bf16.mxu0 0
        %789 = vmatpush2.bf16.xpose.msra.mxu0 0
        %790 = vmatprep.subr.bf16.mxu0 0
        %791 = vmatpush2.bf16.xpose.msra.mxu0 0
        %792 = vmatprep.mubr.bf16.mxu0 0
        %793 = vmatmul.mubr.bf16.gmra.mxu0 %v758
        %v794 = vpop.f32.mrf.mxu0
        %v795 = vadd.f32 0.0, %v794
        %v796 = vpop.f32.mrf.mxu0
        %v797 = vpop.f32.mrf.mxu0
        %v798 = vpop.f32.mrf.mxu0
        %799 = vdwg.mxu0
        %v800 = vsel %vm629, %v795, -1e+30
        %v801 = vsel %vm691, %v800, -inf
        %802 = vmax.xlane.f32.xlu0 %v801
        %v803 = vpop.xlane.xlu0 %802
        %v804 = vsub.f32 %v800, %v803
        %v805 = vmul.f32 %v804, 1.442695
        %v806 = vpow.pop %v805
        %v807 = vsel %vm691, %v806, 0.0
        %808 = vadd.xlane.f32.xlu0 %v807
        %v809 = vpop.xlane.xlu0 %808
        %v810 = vrcp.pop %v809
        %v811 = vmul.f32 %v806, %v810
        %v812 = vpack.c.bf16 %v811, %v811
        %v814 = vsel %vm691, %v812, 0
        %816 = vmatprep.subr.bf16.mxu0 0
        %817 = vmatpush1.bf16.msra.mxu0 0
        %818 = vmatprep.subr.bf16.mxu0 0
        %819 = vmatpush1.bf16.msra.mxu0 0
        %820 = vmatprep.subr.bf16.mxu0 0
        %821 = vmatpush1.bf16.msra.mxu0 0
        %822 = vmatprep.subr.bf16.mxu0 0
        %823 = vmatpush1.bf16.msra.mxu0 0
        %824 = vmatprep.subr.bf16.mxu0 0
        %825 = vmatpush1.bf16.msra.mxu0 0
        %826 = vmatprep.subr.bf16.mxu0 0
        %827 = vmatpush1.bf16.msra.mxu0 0
        %828 = vmatprep.subr.bf16.mxu0 0
        %829 = vmatpush1.bf16.msra.mxu0 0
        %830 = vmatprep.subr.bf16.mxu0 0
        %831 = vmatpush1.bf16.msra.mxu0 %v712
        %832 = vmatprep.subr.bf16.mxu0 0
        %833 = vmatpush2.bf16.msra.mxu0 0
        %834 = vmatprep.subr.bf16.mxu0 0
        %835 = vmatpush2.bf16.msra.mxu0 0
        %836 = vmatprep.subr.bf16.mxu0 0
        %837 = vmatpush2.bf16.msra.mxu0 0
        %838 = vmatprep.subr.bf16.mxu0 0
        %839 = vmatpush2.bf16.msra.mxu0 0
        %840 = vmatprep.subr.bf16.mxu0 0
        %841 = vmatpush2.bf16.msra.mxu0 0
        %842 = vmatprep.subr.bf16.mxu0 0
        %843 = vmatpush2.bf16.msra.mxu0 0
        %844 = vmatprep.subr.bf16.mxu0 0
        %845 = vmatpush2.bf16.msra.mxu0 0
        %846 = vmatprep.subr.bf16.mxu0 0
        %847 = vmatpush2.bf16.msra.mxu0 0
        %848 = vmatprep.mubr.bf16.mxu0 0
        %849 = vmatmul.mubr.bf16.gmra.mxu0 %v814
        %v850 = vpop.f32.mrf.mxu0
        %v851 = vadd.f32 0.0, %v850
        %v852 = vpop.f32.mrf.mxu0
        %v853 = vpop.f32.mrf.mxu0
        %v854 = vpop.f32.mrf.mxu0
        %855 = vdwg.mxu0
        %v856 = vpack.c.bf16 %v851, %v851
        %v859 = vunpack.c.l.b16 %v634
        %v860 = vunpack.c.l.b16 %v635
        %v861 = vpack.c.b16 %v860, %v859
        %v864 = vsel %vm643, %v856, 0
        %866 = vmatprep.subr.bf16.mxu0 0
        %867 = vmatpush1.bf16.msra.mxu0 0
        %868 = vmatprep.subr.bf16.mxu0 0
        %869 = vmatpush1.bf16.msra.mxu0 0
        %870 = vmatprep.subr.bf16.mxu0 0
        %871 = vmatpush1.bf16.msra.mxu0 0
        %872 = vmatprep.subr.bf16.mxu0 0
        %873 = vmatpush1.bf16.msra.mxu0 0
        %874 = vmatprep.subr.bf16.mxu0 0
        %875 = vmatpush1.bf16.msra.mxu0 0
        %876 = vmatprep.subr.bf16.mxu0 0
        %877 = vmatpush1.bf16.msra.mxu0 0
        %878 = vmatprep.subr.bf16.mxu0 0
        %879 = vmatpush1.bf16.msra.mxu0 0
        %880 = vmatprep.subr.bf16.mxu0 0
        %881 = vmatpush1.bf16.msra.mxu0 %v861
        %882 = vmatprep.subr.bf16.mxu0 0
        %883 = vmatpush2.bf16.msra.mxu0 0
        %884 = vmatprep.subr.bf16.mxu0 0
        %885 = vmatpush2.bf16.msra.mxu0 0
        %886 = vmatprep.subr.bf16.mxu0 0
        %887 = vmatpush2.bf16.msra.mxu0 0
        %888 = vmatprep.subr.bf16.mxu0 0
        %889 = vmatpush2.bf16.msra.mxu0 0
        %890 = vmatprep.subr.bf16.mxu0 0
        %891 = vmatpush2.bf16.msra.mxu0 0
        %892 = vmatprep.subr.bf16.mxu0 0
        %893 = vmatpush2.bf16.msra.mxu0 0
        %894 = vmatprep.subr.bf16.mxu0 0
        %895 = vmatpush2.bf16.msra.mxu0 0
        %896 = vmatprep.subr.bf16.mxu0 0
        %897 = vmatpush2.bf16.msra.mxu0 0
        %898 = vmatprep.mubr.bf16.mxu0 0
        %899 = vmatmul.mubr.bf16.gmra.mxu0 %v864
        %v900 = vpop.f32.mrf.mxu0
        %v901 = vadd.f32 0.0, %v900
        %v902 = vpop.f32.mrf.mxu0
        %v903 = vpop.f32.mrf.mxu0
        %v904 = vpop.f32.mrf.mxu0
        %905 = vdwg.mxu0
        %v908 = vunpack.c.l.b16 %v632
        %v909 = vunpack.c.l.b16 %v633
        %v910 = vpack.c.b16 %v909, %v908
        %v913 = vsel %vm643, %v754, 0
        %915 = vmatprep.subr.bf16.mxu0 0
        %916 = vmatpush1.bf16.msra.mxu0 0
        %917 = vmatprep.subr.bf16.mxu0 0
        %918 = vmatpush1.bf16.msra.mxu0 0
        %919 = vmatprep.subr.bf16.mxu0 0
        %920 = vmatpush1.bf16.msra.mxu0 0
        %921 = vmatprep.subr.bf16.mxu0 0
        %922 = vmatpush1.bf16.msra.mxu0 0
        %923 = vmatprep.subr.bf16.mxu0 0
        %924 = vmatpush1.bf16.msra.mxu0 0
        %925 = vmatprep.subr.bf16.mxu0 0
        %926 = vmatpush1.bf16.msra.mxu0 0
        %927 = vmatprep.subr.bf16.mxu0 0
        %928 = vmatpush1.bf16.msra.mxu0 0
        %929 = vmatprep.subr.bf16.mxu0 0
        %930 = vmatpush1.bf16.msra.mxu0 %v910
        %931 = vmatprep.subr.bf16.mxu0 0
        %932 = vmatpush2.bf16.msra.mxu0 0
        %933 = vmatprep.subr.bf16.mxu0 0
        %934 = vmatpush2.bf16.msra.mxu0 0
        %935 = vmatprep.subr.bf16.mxu0 0
        %936 = vmatpush2.bf16.msra.mxu0 0
        %937 = vmatprep.subr.bf16.mxu0 0
        %938 = vmatpush2.bf16.msra.mxu0 0
        %939 = vmatprep.subr.bf16.mxu0 0
        %940 = vmatpush2.bf16.msra.mxu0 0
        %941 = vmatprep.subr.bf16.mxu0 0
        %942 = vmatpush2.bf16.msra.mxu0 0
        %943 = vmatprep.subr.bf16.mxu0 0
        %944 = vmatpush2.bf16.msra.mxu0 0
        %945 = vmatprep.subr.bf16.mxu0 0
        %946 = vmatpush2.bf16.msra.mxu0 0
        %947 = vmatprep.mubr.bf16.mxu0 0
        %948 = vmatmul.mubr.bf16.gmra.mxu0 %v913
        %v949 = vpop.f32.mrf.mxu0
        %v950 = vadd.f32 %v901, %v949
        %v951 = vpop.f32.mrf.mxu0
        %v952 = vpop.f32.mrf.mxu0
        %v953 = vpop.f32.mrf.mxu0
        %954 = vdwg.mxu0
        %955 = vrot.lane.b32.xlu0 %v630, 96
        %v956 = vpop.permute.xlu0 %955
        %957 = vrot.lane.b32.xlu0 %v630, 48
        %v958 = vpop.permute.xlu0 %957
        %v960 = vsel %vm643, %v956, 0
        %v963 = vsel %vm643, %v958, 0
        %965 = vmatprep.subr.bf16.mxu0 0
        %966 = vmatpush1.bf16.xpose.msra.mxu0 0
        %967 = vmatprep.subr.bf16.mxu0 0
        %968 = vmatpush1.bf16.xpose.msra.mxu0 0
        %969 = vmatprep.subr.bf16.mxu0 0
        %970 = vmatpush1.bf16.xpose.msra.mxu0 0
        %971 = vmatprep.subr.bf16.mxu0 0
        %972 = vmatpush1.bf16.xpose.msra.mxu0 0
        %973 = vmatprep.subr.bf16.mxu0 0
        %974 = vmatpush1.bf16.xpose.msra.mxu0 0
        %975 = vmatprep.subr.bf16.mxu0 0
        %976 = vmatpush1.bf16.xpose.msra.mxu0 0
        %977 = vmatprep.subr.bf16.mxu0 0
        %978 = vmatpush1.bf16.xpose.msra.mxu0 0
        %979 = vmatprep.subr.bf16.mxu0 0
        %980 = vmatpush1.bf16.xpose.msra.mxu0 %v963
        %981 = vmatprep.subr.bf16.mxu0 0
        %982 = vmatpush2.bf16.xpose.msra.mxu0 0
        %983 = vmatprep.subr.bf16.mxu0 0
        %984 = vmatpush2.bf16.xpose.msra.mxu0 0
        %985 = vmatprep.subr.bf16.mxu0 0
        %986 = vmatpush2.bf16.xpose.msra.mxu0 0
        %987 = vmatprep.subr.bf16.mxu0 0
        %988 = vmatpush2.bf16.xpose.msra.mxu0 0
        %989 = vmatprep.subr.bf16.mxu0 0
        %990 = vmatpush2.bf16.xpose.msra.mxu0 0
        %991 = vmatprep.subr.bf16.mxu0 0
        %992 = vmatpush2.bf16.xpose.msra.mxu0 0
        %993 = vmatprep.subr.bf16.mxu0 0
        %994 = vmatpush2.bf16.xpose.msra.mxu0 0
        %995 = vmatprep.subr.bf16.mxu0 0
        %996 = vmatpush2.bf16.xpose.msra.mxu0 0
        %997 = vmatprep.mubr.bf16.mxu0 0
        %998 = vmatmul.mubr.bf16.gmra.mxu0 %v960
        %v999 = vpop.f32.mrf.mxu0
        %v1000 = vadd.f32 0.0, %v999
        %v1001 = vpop.f32.mrf.mxu0
        %v1002 = vpop.f32.mrf.mxu0
        %v1003 = vpop.f32.mrf.mxu0
        %1004 = vdwg.mxu0
        %v1005 = vsel %vm629, %v1000, -1e+30
        %v1006 = vsel %vm691, %v1005, -inf
        %1007 = vmax.xlane.f32.xlu0 %v1006
        %v1008 = vpop.xlane.xlu0 %1007
        %v1009 = vsub.f32 %v1005, %v1008
        %v1010 = vmul.f32 %v1009, 1.442695
        %v1011 = vpow.pop %v1010
        %v1012 = vsel %vm691, %v1011, 0.0
        %1013 = vadd.xlane.f32.xlu0 %v1012
        %v1014 = vpop.xlane.xlu0 %1013
        %v1015 = vrcp.pop %v1014
        %v1016 = vmul.f32 %v1011, %v1015
        %v1017 = vpack.c.bf16 %v1016, %v1016
        %1018 = vrot.lane.b32.xlu0 %v631, 16
        %v1019 = vpop.permute.xlu0 %1018
        %v1021 = vsel %vm691, %v1017, 0
        %v1024 = vsel %vm710, %v1019, 0
        %1026 = vmatprep.subr.bf16.mxu0 0
        %1027 = vmatpush1.bf16.msra.mxu0 0
        %1028 = vmatprep.subr.bf16.mxu0 0
        %1029 = vmatpush1.bf16.msra.mxu0 0
        %1030 = vmatprep.subr.bf16.mxu0 0
        %1031 = vmatpush1.bf16.msra.mxu0 0
        %1032 = vmatprep.subr.bf16.mxu0 0
        %1033 = vmatpush1.bf16.msra.mxu0 0
        %1034 = vmatprep.subr.bf16.mxu0 0
        %1035 = vmatpush1.bf16.msra.mxu0 0
        %1036 = vmatprep.subr.bf16.mxu0 0
        %1037 = vmatpush1.bf16.msra.mxu0 0
        %1038 = vmatprep.subr.bf16.mxu0 0
        %1039 = vmatpush1.bf16.msra.mxu0 0
        %1040 = vmatprep.subr.bf16.mxu0 0
        %1041 = vmatpush1.bf16.msra.mxu0 %v1024
        %1042 = vmatprep.subr.bf16.mxu0 0
        %1043 = vmatpush2.bf16.msra.mxu0 0
        %1044 = vmatprep.subr.bf16.mxu0 0
        %1045 = vmatpush2.bf16.msra.mxu0 0
        %1046 = vmatprep.subr.bf16.mxu0 0
        %1047 = vmatpush2.bf16.msra.mxu0 0
        %1048 = vmatprep.subr.bf16.mxu0 0
        %1049 = vmatpush2.bf16.msra.mxu0 0
        %1050 = vmatprep.subr.bf16.mxu0 0
        %1051 = vmatpush2.bf16.msra.mxu0 0
        %1052 = vmatprep.subr.bf16.mxu0 0
        %1053 = vmatpush2.bf16.msra.mxu0 0
        %1054 = vmatprep.subr.bf16.mxu0 0
        %1055 = vmatpush2.bf16.msra.mxu0 0
        %1056 = vmatprep.subr.bf16.mxu0 0
        %1057 = vmatpush2.bf16.msra.mxu0 0
        %1058 = vmatprep.mubr.bf16.mxu0 0
        %1059 = vmatmul.mubr.bf16.gmra.mxu0 %v1021
        %v1060 = vpop.f32.mrf.mxu0
        %v1061 = vadd.f32 0.0, %v1060
        %v1062 = vpop.f32.mrf.mxu0
        %v1063 = vpop.f32.mrf.mxu0
        %v1064 = vpop.f32.mrf.mxu0
        %1065 = vdwg.mxu0
        %v1066 = vpack.c.bf16 %v1061, %v1061
        %v1069 = vunpack.c.l.b16 %v636
        %v1070 = vunpack.c.l.b16 %v637
        %v1071 = vpack.c.b16 %v1070, %v1069
        %v1074 = vsel %vm643, %v1066, 0
        %1076 = vmatprep.subr.bf16.mxu0 0
        %1077 = vmatpush1.bf16.msra.mxu0 0
        %1078 = vmatprep.subr.bf16.mxu0 0
        %1079 = vmatpush1.bf16.msra.mxu0 0
        %1080 = vmatprep.subr.bf16.mxu0 0
        %1081 = vmatpush1.bf16.msra.mxu0 0
        %1082 = vmatprep.subr.bf16.mxu0 0
        %1083 = vmatpush1.bf16.msra.mxu0 0
        %1084 = vmatprep.subr.bf16.mxu0 0
        %1085 = vmatpush1.bf16.msra.mxu0 0
        %1086 = vmatprep.subr.bf16.mxu0 0
        %1087 = vmatpush1.bf16.msra.mxu0 0
        %1088 = vmatprep.subr.bf16.mxu0 0
        %1089 = vmatpush1.bf16.msra.mxu0 0
        %1090 = vmatprep.subr.bf16.mxu0 0
        %1091 = vmatpush1.bf16.msra.mxu0 %v1071
        %1092 = vmatprep.subr.bf16.mxu0 0
        %1093 = vmatpush2.bf16.msra.mxu0 0
        %1094 = vmatprep.subr.bf16.mxu0 0
        %1095 = vmatpush2.bf16.msra.mxu0 0
        %1096 = vmatprep.subr.bf16.mxu0 0
        %1097 = vmatpush2.bf16.msra.mxu0 0
        %1098 = vmatprep.subr.bf16.mxu0 0
        %1099 = vmatpush2.bf16.msra.mxu0 0
        %1100 = vmatprep.subr.bf16.mxu0 0
        %1101 = vmatpush2.bf16.msra.mxu0 0
        %1102 = vmatprep.subr.bf16.mxu0 0
        %1103 = vmatpush2.bf16.msra.mxu0 0
        %1104 = vmatprep.subr.bf16.mxu0 0
        %1105 = vmatpush2.bf16.msra.mxu0 0
        %1106 = vmatprep.subr.bf16.mxu0 0
        %1107 = vmatpush2.bf16.msra.mxu0 0
        %1108 = vmatprep.mubr.bf16.mxu0 0
        %1109 = vmatmul.mubr.bf16.gmra.mxu0 %v1074
        %v1110 = vpop.f32.mrf.mxu0
        %v1111 = vadd.f32 0.0, %v1110
        %v1112 = vpop.f32.mrf.mxu0
        %v1113 = vpop.f32.mrf.mxu0
        %v1114 = vpop.f32.mrf.mxu0
        %1115 = vdwg.mxu0
        %v1116 = vadd.f32 %v950, %v1111
        %1117 = vrot.lane.b32.xlu0 %v630, 80
        %v1118 = vpop.permute.xlu0 %1117
        %v1120 = vsel %vm643, %v1118, 0
        %1122 = vmatprep.subr.bf16.mxu0 0
        %1123 = vmatpush1.bf16.xpose.msra.mxu0 0
        %1124 = vmatprep.subr.bf16.mxu0 0
        %1125 = vmatpush1.bf16.xpose.msra.mxu0 0
        %1126 = vmatprep.subr.bf16.mxu0 0
        %1127 = vmatpush1.bf16.xpose.msra.mxu0 0
        %1128 = vmatprep.subr.bf16.mxu0 0
        %1129 = vmatpush1.bf16.xpose.msra.mxu0 0
        %1130 = vmatprep.subr.bf16.mxu0 0
        %1131 = vmatpush1.bf16.xpose.msra.mxu0 0
        %1132 = vmatprep.subr.bf16.mxu0 0
        %1133 = vmatpush1.bf16.xpose.msra.mxu0 0
        %1134 = vmatprep.subr.bf16.mxu0 0
        %1135 = vmatpush1.bf16.xpose.msra.mxu0 0
        %1136 = vmatprep.subr.bf16.mxu0 0
        %1137 = vmatpush1.bf16.xpose.msra.mxu0 %v963
        %1138 = vmatprep.subr.bf16.mxu0 0
        %1139 = vmatpush2.bf16.xpose.msra.mxu0 0
        %1140 = vmatprep.subr.bf16.mxu0 0
        %1141 = vmatpush2.bf16.xpose.msra.mxu0 0
        %1142 = vmatprep.subr.bf16.mxu0 0
        %1143 = vmatpush2.bf16.xpose.msra.mxu0 0
        %1144 = vmatprep.subr.bf16.mxu0 0
        %1145 = vmatpush2.bf16.xpose.msra.mxu0 0
        %1146 = vmatprep.subr.bf16.mxu0 0
        %1147 = vmatpush2.bf16.xpose.msra.mxu0 0
        %1148 = vmatprep.subr.bf16.mxu0 0
        %1149 = vmatpush2.bf16.xpose.msra.mxu0 0
        %1150 = vmatprep.subr.bf16.mxu0 0
        %1151 = vmatpush2.bf16.xpose.msra.mxu0 0
        %1152 = vmatprep.subr.bf16.mxu0 0
        %1153 = vmatpush2.bf16.xpose.msra.mxu0 0
        %1154 = vmatprep.mubr.bf16.mxu0 0
        %1155 = vmatmul.mubr.bf16.gmra.mxu0 %v1120
        %v1156 = vpop.f32.mrf.mxu0
        %v1157 = vadd.f32 0.0, %v1156
        %v1158 = vpop.f32.mrf.mxu0
        %v1159 = vpop.f32.mrf.mxu0
        %v1160 = vpop.f32.mrf.mxu0
        %1161 = vdwg.mxu0
        %v1162 = vsel %vm629, %v1157, -1e+30
        %v1163 = vsel %vm691, %v1162, -inf
        %1164 = vmax.xlane.f32.xlu0 %v1163
        %v1165 = vpop.xlane.xlu0 %1164
        %v1166 = vsub.f32 %v1162, %v1165
        %v1167 = vmul.f32 %v1166, 1.442695
        %v1168 = vpow.pop %v1167
        %v1169 = vsel %vm691, %v1168, 0.0
        %1170 = vadd.xlane.f32.xlu0 %v1169
        %v1171 = vpop.xlane.xlu0 %1170
        %v1172 = vrcp.pop %v1171
        %v1173 = vmul.f32 %v1168, %v1172
        %v1174 = vpack.c.bf16 %v1173, %v1173
        %v1176 = vsel %vm691, %v1174, 0
        %1178 = vmatprep.subr.bf16.mxu0 0
        %1179 = vmatpush1.bf16.msra.mxu0 0
        %1180 = vmatprep.subr.bf16.mxu0 0
        %1181 = vmatpush1.bf16.msra.mxu0 0
        %1182 = vmatprep.subr.bf16.mxu0 0
        %1183 = vmatpush1.bf16.msra.mxu0 0
        %1184 = vmatprep.subr.bf16.mxu0 0
        %1185 = vmatpush1.bf16.msra.mxu0 0
        %1186 = vmatprep.subr.bf16.mxu0 0
        %1187 = vmatpush1.bf16.msra.mxu0 0
        %1188 = vmatprep.subr.bf16.mxu0 0
        %1189 = vmatpush1.bf16.msra.mxu0 0
        %1190 = vmatprep.subr.bf16.mxu0 0
        %1191 = vmatpush1.bf16.msra.mxu0 0
        %1192 = vmatprep.subr.bf16.mxu0 0
        %1193 = vmatpush1.bf16.msra.mxu0 %v1024
        %1194 = vmatprep.subr.bf16.mxu0 0
        %1195 = vmatpush2.bf16.msra.mxu0 0
        %1196 = vmatprep.subr.bf16.mxu0 0
        %1197 = vmatpush2.bf16.msra.mxu0 0
        %1198 = vmatprep.subr.bf16.mxu0 0
        %1199 = vmatpush2.bf16.msra.mxu0 0
        %1200 = vmatprep.subr.bf16.mxu0 0
        %1201 = vmatpush2.bf16.msra.mxu0 0
        %1202 = vmatprep.subr.bf16.mxu0 0
        %1203 = vmatpush2.bf16.msra.mxu0 0
        %1204 = vmatprep.subr.bf16.mxu0 0
        %1205 = vmatpush2.bf16.msra.mxu0 0
        %1206 = vmatprep.subr.bf16.mxu0 0
        %1207 = vmatpush2.bf16.msra.mxu0 0
        %1208 = vmatprep.subr.bf16.mxu0 0
        %1209 = vmatpush2.bf16.msra.mxu0 0
        %1210 = vmatprep.mubr.bf16.mxu0 0
        %1211 = vmatmul.mubr.bf16.gmra.mxu0 %v1176
        %v1212 = vpop.f32.mrf.mxu0
        %v1213 = vadd.f32 0.0, %v1212
        %v1214 = vpop.f32.mrf.mxu0
        %v1215 = vpop.f32.mrf.mxu0
        %v1216 = vpop.f32.mrf.mxu0
        %1217 = vdwg.mxu0
        %v1218 = vpack.c.bf16 %v1213, %v1213
        %v1221 = vunpack.c.l.b16 %v638
        %v1222 = vunpack.c.l.b16 %v639
        %v1223 = vpack.c.b16 %v1222, %v1221
        %v1226 = vsel %vm643, %v1218, 0
        %1228 = vmatprep.subr.bf16.mxu0 0
        %1229 = vmatpush1.bf16.msra.mxu0 0
        %1230 = vmatprep.subr.bf16.mxu0 0
        %1231 = vmatpush1.bf16.msra.mxu0 0
        %1232 = vmatprep.subr.bf16.mxu0 0
        %1233 = vmatpush1.bf16.msra.mxu0 0
        %1234 = vmatprep.subr.bf16.mxu0 0
        %1235 = vmatpush1.bf16.msra.mxu0 0
        %1236 = vmatprep.subr.bf16.mxu0 0
        %1237 = vmatpush1.bf16.msra.mxu0 0
        %1238 = vmatprep.subr.bf16.mxu0 0
        %1239 = vmatpush1.bf16.msra.mxu0 0
        %1240 = vmatprep.subr.bf16.mxu0 0
        %1241 = vmatpush1.bf16.msra.mxu0 0
        %1242 = vmatprep.subr.bf16.mxu0 0
        %1243 = vmatpush1.bf16.msra.mxu0 %v1223
        %1244 = vmatprep.subr.bf16.mxu0 0
        %1245 = vmatpush2.bf16.msra.mxu0 0
        %1246 = vmatprep.subr.bf16.mxu0 0
        %1247 = vmatpush2.bf16.msra.mxu0 0
        %1248 = vmatprep.subr.bf16.mxu0 0
        %1249 = vmatpush2.bf16.msra.mxu0 0
        %1250 = vmatprep.subr.bf16.mxu0 0
        %1251 = vmatpush2.bf16.msra.mxu0 0
        %1252 = vmatprep.subr.bf16.mxu0 0
        %1253 = vmatpush2.bf16.msra.mxu0 0
        %1254 = vmatprep.subr.bf16.mxu0 0
        %1255 = vmatpush2.bf16.msra.mxu0 0
        %1256 = vmatprep.subr.bf16.mxu0 0
        %1257 = vmatpush2.bf16.msra.mxu0 0
        %1258 = vmatprep.subr.bf16.mxu0 0
        %1259 = vmatpush2.bf16.msra.mxu0 0
        %1260 = vmatprep.mubr.bf16.mxu0 0
        %1261 = vmatmul.mubr.bf16.gmra.mxu0 %v1226
        %v1262 = vpop.f32.mrf.mxu0
        %v1263 = vadd.f32 0.0, %v1262
        %v1264 = vpop.f32.mrf.mxu0
        %v1265 = vpop.f32.mrf.mxu0
        %v1266 = vpop.f32.mrf.mxu0
        %1267 = vdwg.mxu0
        %v1268 = vadd.f32 %v1116, %v1263
        %v1269 = vadd.f32 %v1268, %v501
        %v1270 = vmul.f32 %v1269, %v1269
        %v1271 = vsel %vm504, %v1270, 0.0
        %1272 = vadd.xlane.f32.xlu0 %v1271
        %v1273 = vpop.xlane.xlu0 %1272
        %v1274 = vmul.f32 %v1273, %v508
        %v1275 = vadd.f32 %v1274, 1e-06
        %v1276 = vrsqrt.pop %v1275
        %v1277 = vmul.f32 %v1269, %v1276
        %v1278 = vlaneseq
        %v1279 = vshrl.u32 %v1278, 7
        %v1280 = vsub.s32 1, %v1279
        %v1281 = vrot.slane %v502, %v1280
        %v1282 = vmul.f32 %v1277, %v1281
        %v1283 = vpack.c.bf16 %v1282, %v1282
        %v1284 = vld [vmem:[%s390] sm:$0xf]
        %v1285 = vld [vmem:[%s390 + $0x4] sm:$0xf]
        %v1286 = vld [vmem:[%s390 + $0x8] sm:$0xf]
        %v1287 = vld [vmem:[%s390 + $0xc] sm:$0xf]
        %v1288 = vld [vmem:[%s390 + $0x10] sm:$0xf]
        %v1289 = vld [vmem:[%s390 + $0x14] sm:$0xf]
        %v1290 = vld [vmem:[%s390 + $0x18] sm:$0xf]
        %v1291 = vld [vmem:[%s390 + $0x1c] sm:$0xf]
        %v1300 = vunpack.c.l.b16 %v1284
        %v1301 = vunpack.c.l.b16 %v1285
        %v1302 = vunpack.c.l.b16 %v1286
        %v1303 = vunpack.c.l.b16 %v1287
        %v1304 = vunpack.c.l.b16 %v1288
        %v1305 = vunpack.c.l.b16 %v1289
        %v1306 = vunpack.c.l.b16 %v1290
        %v1307 = vunpack.c.l.b16 %v1291
        %v1308 = vpack.c.b16 %v1301, %v1300
        %v1309 = vpack.c.b16 %v1303, %v1302
        %v1310 = vpack.c.b16 %v1305, %v1304
        %v1311 = vpack.c.b16 %v1307, %v1306
        %v1317 = vsel %vm504, %v1283, 0
        %1319 = vmatprep.subr.bf16.mxu0 0
        %1320 = vmatpush1.bf16.msra.mxu0 0
        %1321 = vmatprep.subr.bf16.mxu0 0
        %1322 = vmatpush1.bf16.msra.mxu0 0
        %1323 = vmatprep.subr.bf16.mxu0 0
        %1324 = vmatpush1.bf16.msra.mxu0 0
        %1325 = vmatprep.subr.bf16.mxu0 0
        %1326 = vmatpush1.bf16.msra.mxu0 0
        %1327 = vmatprep.subr.bf16.mxu0 0
        %1328 = vmatpush1.bf16.msra.mxu0 %v1311
        %1329 = vmatprep.subr.bf16.mxu0 0
        %1330 = vmatpush1.bf16.msra.mxu0 %v1310
        %1331 = vmatprep.subr.bf16.mxu0 0
        %1332 = vmatpush1.bf16.msra.mxu0 %v1309
        %1333 = vmatprep.subr.bf16.mxu0 0
        %1334 = vmatpush1.bf16.msra.mxu0 %v1308
        %1335 = vmatprep.subr.bf16.mxu0 0
        %1336 = vmatpush2.bf16.msra.mxu0 0
        %1337 = vmatprep.subr.bf16.mxu0 0
        %1338 = vmatpush2.bf16.msra.mxu0 0
        %1339 = vmatprep.subr.bf16.mxu0 0
        %1340 = vmatpush2.bf16.msra.mxu0 0
        %1341 = vmatprep.subr.bf16.mxu0 0
        %1342 = vmatpush2.bf16.msra.mxu0 0
        %1343 = vmatprep.subr.bf16.mxu0 0
        %1344 = vmatpush2.bf16.msra.mxu0 0
        %1345 = vmatprep.subr.bf16.mxu0 0
        %1346 = vmatpush2.bf16.msra.mxu0 0
        %1347 = vmatprep.subr.bf16.mxu0 0
        %1348 = vmatpush2.bf16.msra.mxu0 0
        %1349 = vmatprep.subr.bf16.mxu0 0
        %1350 = vmatpush2.bf16.msra.mxu0 0
        %1351 = vmatprep.mubr.bf16.mxu0 0
        %1352 = vmatmul.mubr.bf16.gmra.mxu0 %v1317
        %v1353 = vpop.f32.mrf.mxu0
        %v1354 = vadd.f32 0.0, %v1353
        %v1355 = vpop.f32.mrf.mxu0
        %v1356 = vpop.f32.mrf.mxu0
        %v1357 = vpop.f32.mrf.mxu0
        %1358 = vdwg.mxu0
        %v1359 = vmax.f32 %v1354, 0.0
        %v1360 = vmul.f32 %v1359, %v1359
        %v1361 = vpack.c.bf16 %v1360, %v1360
        %v1362 = vld [vmem:[%s395] sm:$0xf]
        %v1363 = vld [vmem:[%s395 + $0x4] sm:$0xf]
        %v1364 = vld [vmem:[%s395 + $0x8] sm:$0xf]
        %v1365 = vld [vmem:[%s395 + $0xc] sm:$0xf]
        %v1366 = vld [vmem:[%s395 + $0x10] sm:$0xf]
        %v1367 = vld [vmem:[%s395 + $0x14] sm:$0xf]
        %v1368 = vld [vmem:[%s395 + $0x18] sm:$0xf]
        %v1369 = vld [vmem:[%s395 + $0x1c] sm:$0xf]
        %v1370 = vld [vmem:[%s395 + $0x20] sm:$0xf]
        %v1371 = vld [vmem:[%s395 + $0x24] sm:$0xf]
        %v1372 = vld [vmem:[%s395 + $0x28] sm:$0xf]
        %v1373 = vld [vmem:[%s395 + $0x2c] sm:$0xf]
        %v1374 = vld [vmem:[%s395 + $0x30] sm:$0xf]
        %v1375 = vld [vmem:[%s395 + $0x34] sm:$0xf]
        %v1376 = vld [vmem:[%s395 + $0x38] sm:$0xf]
        %v1377 = vld [vmem:[%s395 + $0x3c] sm:$0xf]
        %v1394 = vunpack.c.l.b16 %v1362
        %v1395 = vunpack.c.l.b16 %v1363
        %v1396 = vunpack.c.l.b16 %v1364
        %v1397 = vunpack.c.l.b16 %v1365
        %v1398 = vunpack.c.l.b16 %v1366
        %v1399 = vunpack.c.l.b16 %v1367
        %v1400 = vunpack.c.l.b16 %v1368
        %v1401 = vunpack.c.l.b16 %v1369
        %v1402 = vunpack.c.l.b16 %v1370
        %v1403 = vunpack.c.l.b16 %v1371
        %v1404 = vunpack.c.l.b16 %v1372
        %v1405 = vunpack.c.l.b16 %v1373
        %v1406 = vunpack.c.l.b16 %v1374
        %v1407 = vunpack.c.l.b16 %v1375
        %v1408 = vunpack.c.l.b16 %v1376
        %v1409 = vunpack.c.l.b16 %v1377
        %v1410 = vpack.c.b16 %v1395, %v1394
        %v1411 = vpack.c.b16 %v1397, %v1396
        %v1412 = vpack.c.b16 %v1399, %v1398
        %v1413 = vpack.c.b16 %v1401, %v1400
        %v1414 = vpack.c.b16 %v1403, %v1402
        %v1415 = vpack.c.b16 %v1405, %v1404
        %v1416 = vpack.c.b16 %v1407, %v1406
        %v1417 = vpack.c.b16 %v1409, %v1408
        %1426 = vmatprep.subr.bf16.mxu0 0
        %1427 = vmatpush1.bf16.msra.mxu0 %v1417
        %1428 = vmatprep.subr.bf16.mxu0 0
        %1429 = vmatpush1.bf16.msra.mxu0 %v1416
        %1430 = vmatprep.subr.bf16.mxu0 0
        %1431 = vmatpush1.bf16.msra.mxu0 %v1415
        %1432 = vmatprep.subr.bf16.mxu0 0
        %1433 = vmatpush1.bf16.msra.mxu0 %v1414
        %1434 = vmatprep.subr.bf16.mxu0 0
        %1435 = vmatpush1.bf16.msra.mxu0 %v1413
        %1436 = vmatprep.subr.bf16.mxu0 0
        %1437 = vmatpush1.bf16.msra.mxu0 %v1412
        %1438 = vmatprep.subr.bf16.mxu0 0
        %1439 = vmatpush1.bf16.msra.mxu0 %v1411
        %1440 = vmatprep.subr.bf16.mxu0 0
        %1441 = vmatpush1.bf16.msra.mxu0 %v1410
        %1442 = vmatprep.subr.bf16.mxu0 0
        %1443 = vmatpush2.bf16.msra.mxu0 0
        %1444 = vmatprep.subr.bf16.mxu0 0
        %1445 = vmatpush2.bf16.msra.mxu0 0
        %1446 = vmatprep.subr.bf16.mxu0 0
        %1447 = vmatpush2.bf16.msra.mxu0 0
        %1448 = vmatprep.subr.bf16.mxu0 0
        %1449 = vmatpush2.bf16.msra.mxu0 0
        %1450 = vmatprep.subr.bf16.mxu0 0
        %1451 = vmatpush2.bf16.msra.mxu0 0
        %1452 = vmatprep.subr.bf16.mxu0 0
        %1453 = vmatpush2.bf16.msra.mxu0 0
        %1454 = vmatprep.subr.bf16.mxu0 0
        %1455 = vmatpush2.bf16.msra.mxu0 0
        %1456 = vmatprep.subr.bf16.mxu0 0
        %1457 = vmatpush2.bf16.msra.mxu0 0
        %1458 = vmatprep.mubr.bf16.mxu0 0
        %1459 = vmatmul.mubr.bf16.gmra.mxu0 %v1361
        %v1460 = vpop.f32.mrf.mxu0
        %v1461 = vadd.f32 0.0, %v1460
        %v1462 = vpop.f32.mrf.mxu0
        %v1463 = vpop.f32.mrf.mxu0
        %v1464 = vpop.f32.mrf.mxu0
        %1465 = vdwg.mxu0
        %1466 = vst.msk [vmem:[#allocation2] sm:$0xff] %vm504, %v1461
        %1467 = vst.msk [vmem:[#allocation3] sm:$0xff] %vm504, %v1269
        %p1468 = scmp.eq.s32.totalorder %s21, 1
        // Predicated region
        $region61: #{arcee_model_forward.1} parent=55 // pred_check
          %p1469 = pneg %p1468
        $region62: #{arcee_model_forward.1} parent=55 // pred_check_branch
          %1471 = sbr.rel (%p1469) target = $region64
        $region63: #{arcee_model_forward.1} parent=55 // pred_region
          %v1472 = vadd.f32 %v1461, %v1269
          %v1473 = vmul.f32 %v1472, %v1472
          %v1474 = vsel %vm504, %v1473, 0.0
          %1475 = vadd.xlane.f32.xlu0 %v1474
          %v1476 = vpop.xlane.xlu0 %1475
          %v1477 = vmul.f32 %v1476, %v508
          %v1478 = vadd.f32 %v1477, 1e-06
          %v1479 = vrsqrt.pop %v1478
          %v1480 = vmul.f32 %v1472, %v1479
          %v1481 = vld [vmem:[%s8] sm:$0x1]
          %v1483 = vlaneseq
          %v1484 = vshrl.u32 %v1483, 7
          %v1485 = vsub.s32 0, %v1484
          %v1486 = vrot.slane %v1481, %v1485
          %v1488 = vmul.f32 %v1480, %v1486
          %1489 = vst.msk [vmem:[#allocation4] sm:$0xff] %vm504, %v1488
        $region64: #{arcee_model_forward.1} parent=55 // pred_fallthru
          _
        // Predicated region
        $region65: #{arcee_model_forward.1} parent=55 // pred_check
          %p1490 = pneg %p248
        $region66: #{arcee_model_forward.1} parent=55 // pred_check_branch
          %1492 = sbr.rel (%p1490) target = $region68
        $region67: #{arcee_model_forward.1} parent=55 // pred_region
          %s1494 = ssub.s32 128, 128
          %1495 = vsyncadd [#allocation5], %s1494
          %s1497 = sshll.u32 [#allocation4], 4
          %s1498 = int_to_ptr.vmem [resolvable:$true] %s1497
          %1500 = dma.vmem_to_hbm [thread:$0]  %s1498, 128, %s9, [#allocation5]
        $region68: #{arcee_model_forward.1} parent=55 // pred_fallthru
          _
        // Predicated region
        $region69: #{arcee_model_forward.1} parent=55 // pred_check
          %p1501 = pneg %p248
        $region70: #{arcee_model_forward.1} parent=55 // pred_check_branch
          %1503 = sbr.rel (%p1501) target = $region72
        $region71: #{arcee_model_forward.1} parent=55 // pred_region
          %1504 = dma.done [#allocation5], 128
        $region72: #{arcee_model_forward.1} parent=55 // pred_fallthru
          _
      $region56: #{arcee_model_forward.1} parent=5 // pred_fallthru
        _
      %p1505 = scmp.le.s32.totalorder 2, %s16
      // Predicated region
      $region73: #{arcee_model_forward.1} parent=5 // pred_check
        %p1506 = pneg %p1505
      $region74: #{arcee_model_forward.1} parent=5 // pred_check_branch
        %1508 = sbr.rel (%p1506) target = $region76
      $region75: #{arcee_model_forward.1} parent=5 // pred_region
        %s1509 = ssub.s32 %s16, 2
      $region76: #{arcee_model_forward.1} parent=5 // pred_fallthru
        _
    $region6: #{arcee_model_forward.1} parent=1 // loop_footer
      %s20 = sadd.s32 1, %s16
    $region7: #{arcee_model_forward.1} parent=1 // loop_footer_branch
      %15 = sbr.rel target = $region3
    $region8: #{arcee_model_forward.1} parent=1 // loop_exit
      _
    %1510 = vsyncpa [#allocation5], 1
    %s1511 = scalar_lea.sflag [#allocation5], 1
    %1512 = vsyncpa %s1511, 1

</llo_original>
